<compile_context>
chip_gen: v5e
topology: v5e:2x2
jax: 0.10.0
libtpu: 0.0.40
codegen_flags: <defaults>
</compile_context>

<pallas_src>
import math

import jax
import jax.numpy as jnp
from jax.experimental import pallas as pl
from jax.experimental.pallas import tpu as pltpu  # noqa: F401  (kept for parity)

# ----------------------------- config (small) -------------------------------
VOCAB = 30
MAX_POS = 16
TYPE_VOCAB = 2
HIDDEN = 32          # opt.bert_dim
HEADS = 2
HEAD_DIM = HIDDEN // HEADS
FFN = 64
LAYERS = 2
SEQ = 8
BATCH = 2
POLARITIES = 3       # opt.polarities_dim
LN_EPS = 1e-12
LANE_PAD = 128       # classifier output padded to a full lane tile


# ----------------------------- in-kernel helpers ----------------------------
def _layernorm(x, g, b):
    mu = jnp.mean(x, axis=-1, keepdims=True)
    var = jnp.mean((x - mu) ** 2, axis=-1, keepdims=True)
    return (x - mu) * jax.lax.rsqrt(var + LN_EPS) * g + b


def _gelu(x):
    # tanh approximation of GELU (BERT style)
    return 0.5 * x * (1.0 + jnp.tanh(0.7978845608028654 * (x + 0.044715 * x * x * x)))


# ----------------------------- fused Pallas kernel --------------------------
def fused_bert_kernel(x_ref, mask_ref, emb_g_ref, emb_b_ref,
                      wqkv_ref, bqkv_ref, wo_ref, bo_ref, g1_ref, be1_ref,
                      w1_ref, b1_ref, w2_ref, b2_ref, g2_ref, be2_ref,
                      wp_ref, bp_ref, wc_ref, bc_ref, o_ref):
    # embedding LayerNorm over the whole (B*S, H) slab
    x = _layernorm(x_ref[...], emb_g_ref[...], emb_b_ref[...])        # (BS, H)
    mask = mask_ref[...]                                               # (BS, BS) additive
    scale = 1.0 / math.sqrt(HEAD_DIM)

    # static unroll over layers; per-layer weights read once per iteration
    for l in range(LAYERS):
        # fused QKV projection: one (BS,H) x (H,3H) matmul
        qkv = jnp.dot(x, wqkv_ref[l], preferred_element_type=jnp.float32) + bqkv_ref[l]
        q = qkv[:, 0 * HIDDEN:1 * HIDDEN]
        k = qkv[:, 1 * HIDDEN:2 * HIDDEN]
        v = qkv[:, 2 * HIDDEN:3 * HIDDEN]

        ctx_heads = []
        for h in range(HEADS):                    # static head loop; lane slices are cheap
            sl = slice(h * HEAD_DIM, (h + 1) * HEAD_DIM)
            qh, kh, vh = q[:, sl], k[:, sl], v[:, sl]
            s = jax.lax.dot_general(qh, kh, (((1,), (1,)), ((), ())),
                                    preferred_element_type=jnp.float32)  # (BS, BS)
            # block-diagonal mask keeps the flattened batches from attending
            # to each other (exactly equivalent to per-batch softmax)
            s = s * scale + mask
            s = s - jnp.max(s, axis=-1, keepdims=True)
            p = jnp.exp(s)
            p = p * pl.reciprocal(jnp.sum(p, axis=-1, keepdims=True), approx=True)
            ctx_heads.append(jnp.dot(p, vh, preferred_element_type=jnp.float32))
        ctx = jnp.concatenate(ctx_heads, axis=-1)                      # (BS, H)

        # single output projection after the head loop
        attn = jnp.dot(ctx, wo_ref[l], preferred_element_type=jnp.float32) + bo_ref[l]
        h1 = _layernorm(x + attn, g1_ref[l], be1_ref[l])

        ffn = _gelu(jnp.dot(h1, w1_ref[l], preferred_element_type=jnp.float32) + b1_ref[l])
        ffn = jnp.dot(ffn, w2_ref[l], preferred_element_type=jnp.float32) + b2_ref[l]
        x = _layernorm(h1 + ffn, g2_ref[l], be2_ref[l])

    # pooler + classifier.  Computed for every row so all matmuls/stores stay
    # sublane/lane dense; the CLS rows + real logit columns are selected in
    # the wrapper.  Classifier lanes are zero-padded to 128 -> unmasked vst.
    pooled = jnp.tanh(jnp.dot(x, wp_ref[...], preferred_element_type=jnp.float32)
                      + bp_ref[...])
    # TODO(synk): nn.Dropout is identity in eval mode; training-mode RNG masking omitted.
    o_ref[...] = (jnp.dot(pooled, wc_ref[...], preferred_element_type=jnp.float32)
                  + bc_ref[...])


# ----------------------------- parameter packing ----------------------------
def pack_params(params):
    L = params["layers"]

    def stack(name):
        return jnp.stack([lp[name] for lp in L], axis=0)

    pp = params["pooler_cls"]
    wc_pad = jnp.zeros((HIDDEN, LANE_PAD), jnp.float32).at[:, :POLARITIES].set(pp["wc"])
    bc_pad = jnp.zeros((1, LANE_PAD), jnp.float32).at[:, :POLARITIES].set(pp["bc"])
    return {
        "emb_g": params["emb_g"], "emb_b": params["emb_b"],
        "wqkv": jnp.stack([jnp.concatenate([lp["wq"], lp["wk"], lp["wv"]], axis=1)
                           for lp in L], axis=0),                       # (L, H, 3H)
        "bqkv": jnp.stack([jnp.concatenate([lp["bq"], lp["bk"], lp["bv"]], axis=1)
                           for lp in L], axis=0),                       # (L, 1, 3H)
        "wo": stack("wo"), "bo": stack("bo"),
        "g1": stack("g1"), "be1": stack("be1"),
        "w1": stack("w1"), "b1": stack("b1"),
        "w2": stack("w2"), "b2": stack("b2"),
        "g2": stack("g2"), "be2": stack("be2"),
        "wp": pp["wp"], "bp": pp["bp"],
        "wc": wc_pad, "bc": bc_pad,
    }


def _attn_mask(B, S):
    ids = jnp.repeat(jnp.arange(B), S)                 # (B*S,)
    same = ids[:, None] == ids[None, :]
    return jnp.where(same, 0.0, -1e30).astype(jnp.float32)


# ----------------------------- full forward ---------------------------------
def bert_simple_forward(token_ids, params):
    B, S = token_ids.shape
    # glue: embedding gather + sum (word + position + token_type 0)
    word = jnp.take(params["word_emb"], token_ids, axis=0)              # (B, S, H)
    pos = params["pos_emb"][:S][None, :, :]
    typ = params["type_emb"][0][None, None, :]
    emb = (word + pos + typ).astype(jnp.float32).reshape(B * S, HIDDEN)

    p = pack_params(params)
    mask = _attn_mask(B, S)

    out_pad = pl.pallas_call(
        fused_bert_kernel,
        out_shape=jax.ShapeDtypeStruct((B * S, LANE_PAD), jnp.float32),
        # no grid: single invocation; every input is a full-array VMEM block,
        # so all weights (~50 KB) are loaded once and stay VMEM-resident.
    )(emb, mask, p["emb_g"], p["emb_b"],
      p["wqkv"], p["bqkv"], p["wo"], p["bo"], p["g1"], p["be1"],
      p["w1"], p["b1"], p["w2"], p["b2"], p["g2"], p["be2"],
      p["wp"], p["bp"], p["wc"], p["bc"])

    # CLS row of each sequence, first POLARITIES columns of the padded logits.
    return out_pad.reshape(B, S, LANE_PAD)[:, 0, :POLARITIES]


# ----------------------------- parameters -----------------------------------
def init_params(key):
    def nrm(k, shape, scale=0.02):
        return (scale * jax.random.normal(k, shape)).astype(jnp.float32)

    keys = iter(jax.random.split(key, 64))
    params = {
        "word_emb": nrm(next(keys), (VOCAB, HIDDEN)),
        "pos_emb": nrm(next(keys), (MAX_POS, HIDDEN)),
        "type_emb": nrm(next(keys), (TYPE_VOCAB, HIDDEN)),
        "emb_g": jnp.ones((1, HIDDEN), jnp.float32),
        "emb_b": jnp.zeros((1, HIDDEN), jnp.float32),
        "layers": [],
        "pooler_cls": {
            "wp": nrm(next(keys), (HIDDEN, HIDDEN)),
            "bp": jnp.zeros((1, HIDDEN), jnp.float32),
            "wc": nrm(next(keys), (HIDDEN, POLARITIES)),   # self.dense weight
            "bc": jnp.zeros((1, POLARITIES), jnp.float32), # self.dense bias
        },
    }
    for _ in range(LAYERS):
        params["layers"].append({
            "wq": nrm(next(keys), (HIDDEN, HIDDEN)), "bq": jnp.zeros((1, HIDDEN), jnp.float32),
            "wk": nrm(next(keys), (HIDDEN, HIDDEN)), "bk": jnp.zeros((1, HIDDEN), jnp.float32),
            "wv": nrm(next(keys), (HIDDEN, HIDDEN)), "bv": jnp.zeros((1, HIDDEN), jnp.float32),
            "wo": nrm(next(keys), (HIDDEN, HIDDEN)), "bo": jnp.zeros((1, HIDDEN), jnp.float32),
            "g1": jnp.ones((1, HIDDEN), jnp.float32), "be1": jnp.zeros((1, HIDDEN), jnp.float32),
            "w1": nrm(next(keys), (HIDDEN, FFN)), "b1": jnp.zeros((1, FFN), jnp.float32),
            "w2": nrm(next(keys), (FFN, HIDDEN)), "b2": jnp.zeros((1, HIDDEN), jnp.float32),
            "g2": jnp.ones((1, HIDDEN), jnp.float32), "be2": jnp.zeros((1, HIDDEN), jnp.float32),
        })
    return params


# ----------------------------- pure-JAX reference ---------------------------
def _ref_forward(token_ids, params):
    B, S = token_ids.shape
    word = jnp.take(params["word_emb"], token_ids, axis=0)
    x = word + params["pos_emb"][:S][None] + params["type_emb"][0][None, None]
    x = _layernorm(x, params["emb_g"][0], params["emb_b"][0])
    for lp in params["layers"]:
        q = x @ lp["wq"] + lp["bq"][0]
        k = x @ lp["wk"] + lp["bk"][0]
        v = x @ lp["wv"] + lp["bv"][0]
        attn = lp["bo"][0]
        for h in range(HEADS):
            sl = slice(h * HEAD_DIM, (h + 1) * HEAD_DIM)
            s = jnp.einsum("bqd,bkd->bqk", q[..., sl], k[..., sl]) / math.sqrt(HEAD_DIM)
            p = jax.nn.softmax(s, axis=-1)
            attn = attn + jnp.einsum("bqk,bkd->bqd", p, v[..., sl]) @ lp["wo"][sl, :]
        h1 = _layernorm(x + attn, lp["g1"][0], lp["be1"][0])
        f = _gelu(h1 @ lp["w1"] + lp["b1"][0]) @ lp["w2"] + lp["b2"][0]
        x = _layernorm(h1 + f, lp["g2"][0], lp["be2"][0])
    pp = params["pooler_cls"]
    pooled = jnp.tanh(x[:, 0, :] @ pp["wp"] + pp["bp"][0])
    return pooled @ pp["wc"] + pp["bc"][0]


# ----------------------------- main ------------------------------------------
if __name__ == "__main__":
    key = jax.random.PRNGKey(0)
    k_tok, k_params = jax.random.split(key)
    params = init_params(k_params)
    token_ids = jax.random.randint(k_tok, (BATCH, SEQ), 0, VOCAB, dtype=jnp.int32)

    logits = bert_simple_forward(token_ids, params)
    logits = jax.block_until_ready(logits)

    ref = _ref_forward(token_ids, params)
    assert logits.shape == (BATCH, POLARITIES)
    # slightly relaxed vs exact divide because softmax uses approx reciprocal (EUP)
    assert jnp.allclose(logits, ref, atol=2e-4, rtol=2e-4), (logits, ref)

    print("KERNEL_OK")
</pallas_src>

<mosaic_0001>
module attributes {stable_mosaic.version = 11 : i64} {
  func.func @fused_bert_kernel(%arg0: memref<16x32xf32, #tpu.memory_space<vmem>>, %arg1: memref<16x16xf32, #tpu.memory_space<vmem>>, %arg2: memref<1x32xf32, #tpu.memory_space<vmem>>, %arg3: memref<1x32xf32, #tpu.memory_space<vmem>>, %arg4: memref<2x32x96xf32, #tpu.memory_space<vmem>>, %arg5: memref<2x1x96xf32, #tpu.memory_space<vmem>>, %arg6: memref<2x32x32xf32, #tpu.memory_space<vmem>>, %arg7: memref<2x1x32xf32, #tpu.memory_space<vmem>>, %arg8: memref<2x1x32xf32, #tpu.memory_space<vmem>>, %arg9: memref<2x1x32xf32, #tpu.memory_space<vmem>>, %arg10: memref<2x32x64xf32, #tpu.memory_space<vmem>>, %arg11: memref<2x1x64xf32, #tpu.memory_space<vmem>>, %arg12: memref<2x64x32xf32, #tpu.memory_space<vmem>>, %arg13: memref<2x1x32xf32, #tpu.memory_space<vmem>>, %arg14: memref<2x1x32xf32, #tpu.memory_space<vmem>>, %arg15: memref<2x1x32xf32, #tpu.memory_space<vmem>>, %arg16: memref<32x32xf32, #tpu.memory_space<vmem>>, %arg17: memref<1x32xf32, #tpu.memory_space<vmem>>, %arg18: memref<32x128xf32, #tpu.memory_space<vmem>>, %arg19: memref<1x128xf32, #tpu.memory_space<vmem>>, %arg20: memref<16x128xf32, #tpu.memory_space<vmem>>) attributes {dimension_semantics = [], scalar_prefetch = 0 : i64, scratch_operands = 0 : i64, tpu.core_type = #tpu.core_type<tc>} {
    %c0 = arith.constant 0 : index
    %c0_0 = arith.constant 0 : index
    %0 = vector.load %arg0[%c0, %c0_0] : memref<16x32xf32, #tpu.memory_space<vmem>>, vector<16x32xf32>
    %c0_1 = arith.constant 0 : index
    %c0_2 = arith.constant 0 : index
    %1 = vector.load %arg2[%c0_1, %c0_2] : memref<1x32xf32, #tpu.memory_space<vmem>>, vector<1x32xf32>
    %c0_3 = arith.constant 0 : index
    %c0_4 = arith.constant 0 : index
    %2 = vector.load %arg3[%c0_3, %c0_4] : memref<1x32xf32, #tpu.memory_space<vmem>>, vector<1x32xf32>
    %cst = arith.constant dense<0.000000e+00> : vector<16xf32>
    %3 = vector.multi_reduction <add>, %0, %cst [1] : vector<16x32xf32> to vector<16xf32>
    %4 = vector.shape_cast %3 : vector<16xf32> to vector<16x1xf32>
    %cst_5 = arith.constant 3.200000e+01 : f32
    %5 = vector.broadcast %cst_5 : f32 to vector<16x1xf32>
    %6 = arith.divf %4, %5 : vector<16x1xf32>
    %7 = vector.broadcast %6 : vector<16x1xf32> to vector<16x32xf32>
    %8 = arith.subf %0, %7 : vector<16x32xf32>
    %9 = arith.mulf %8, %8 : vector<16x32xf32>
    %cst_6 = arith.constant dense<0.000000e+00> : vector<16xf32>
    %10 = vector.multi_reduction <add>, %9, %cst_6 [1] : vector<16x32xf32> to vector<16xf32>
    %11 = vector.shape_cast %10 : vector<16xf32> to vector<16x1xf32>
    %cst_7 = arith.constant 3.200000e+01 : f32
    %12 = vector.broadcast %cst_7 : f32 to vector<16x1xf32>
    %13 = arith.divf %11, %12 : vector<16x1xf32>
    %14 = vector.broadcast %6 : vector<16x1xf32> to vector<16x32xf32>
    %15 = arith.subf %0, %14 : vector<16x32xf32>
    %cst_8 = arith.constant 9.99999996E-13 : f32
    %16 = vector.broadcast %cst_8 : f32 to vector<16x1xf32>
    %17 = arith.addf %13, %16 : vector<16x1xf32>
    %18 = math.rsqrt %17 : vector<16x1xf32>
    %19 = vector.broadcast %18 : vector<16x1xf32> to vector<16x32xf32>
    %20 = arith.mulf %15, %19 : vector<16x32xf32>
    %21 = vector.broadcast %1 : vector<1x32xf32> to vector<16x32xf32>
    %22 = arith.mulf %20, %21 : vector<16x32xf32>
    %23 = vector.broadcast %2 : vector<1x32xf32> to vector<16x32xf32>
    %24 = arith.addf %22, %23 : vector<16x32xf32>
    %c0_9 = arith.constant 0 : index
    %c0_10 = arith.constant 0 : index
    %25 = vector.load %arg1[%c0_9, %c0_10] : memref<16x16xf32, #tpu.memory_space<vmem>>, vector<16x16xf32>
    %c0_11 = arith.constant 0 : index
    %c0_12 = arith.constant 0 : index
    %c0_13 = arith.constant 0 : index
    %26 = vector.load %arg4[%c0_11, %c0_12, %c0_13] : memref<2x32x96xf32, #tpu.memory_space<vmem>>, vector<1x32x96xf32>
    %27 = vector.shape_cast %26 : vector<1x32x96xf32> to vector<32x96xf32>
    %cst_14 = arith.constant dense<0.000000e+00> : vector<16x96xf32>
    %28 = tpu.matmul %24, %27, %cst_14 {dimension_numbers = #tpu.dot_dimension_numbers<[1], [0], [0], [1], [0, 0, 1, 1], [], []>} : vector<16x32xf32>, vector<32x96xf32>, vector<16x96xf32> -> vector<16x96xf32>
    %c0_15 = arith.constant 0 : index
    %c0_16 = arith.constant 0 : index
    %c0_17 = arith.constant 0 : index
    %29 = vector.load %arg5[%c0_15, %c0_16, %c0_17] : memref<2x1x96xf32, #tpu.memory_space<vmem>>, vector<1x1x96xf32>
    %30 = vector.shape_cast %29 : vector<1x1x96xf32> to vector<1x96xf32>
    %31 = vector.broadcast %30 : vector<1x96xf32> to vector<16x96xf32>
    %32 = arith.addf %28, %31 : vector<16x96xf32>
    %33 = vector.extract_strided_slice %32 {offsets = [0, 0], sizes = [16, 32], strides = [1, 1]} : vector<16x96xf32> to vector<16x32xf32>
    %34 = vector.extract_strided_slice %32 {offsets = [0, 32], sizes = [16, 32], strides = [1, 1]} : vector<16x96xf32> to vector<16x32xf32>
    %35 = vector.extract_strided_slice %32 {offsets = [0, 64], sizes = [16, 32], strides = [1, 1]} : vector<16x96xf32> to vector<16x32xf32>
    %36 = vector.extract_strided_slice %33 {offsets = [0, 0], sizes = [16, 16], strides = [1, 1]} : vector<16x32xf32> to vector<16x16xf32>
    %37 = vector.extract_strided_slice %34 {offsets = [0, 0], sizes = [16, 16], strides = [1, 1]} : vector<16x32xf32> to vector<16x16xf32>
    %38 = vector.extract_strided_slice %35 {offsets = [0, 0], sizes = [16, 16], strides = [1, 1]} : vector<16x32xf32> to vector<16x16xf32>
    %cst_18 = arith.constant dense<0.000000e+00> : vector<16x16xf32>
    %39 = tpu.matmul %36, %37, %cst_18 {dimension_numbers = #tpu.dot_dimension_numbers<[1], [1], [0], [0], [0, 0, 1, 0], [], []>} : vector<16x16xf32>, vector<16x16xf32>, vector<16x16xf32> -> vector<16x16xf32>
    %cst_19 = arith.constant 2.500000e-01 : f32
    %40 = vector.broadcast %cst_19 : f32 to vector<16x16xf32>
    %41 = arith.mulf %39, %40 : vector<16x16xf32>
    %42 = arith.addf %41, %25 : vector<16x16xf32>
    %cst_20 = arith.constant dense<0xFF800000> : vector<16xf32>
    %43 = vector.multi_reduction <maximumf>, %42, %cst_20 [1] : vector<16x16xf32> to vector<16xf32>
    %44 = vector.shape_cast %43 : vector<16xf32> to vector<16x1xf32>
    %45 = vector.broadcast %44 : vector<16x1xf32> to vector<16x16xf32>
    %46 = arith.subf %42, %45 : vector<16x16xf32>
    %47 = math.exp %46 : vector<16x16xf32>
    %cst_21 = arith.constant dense<0.000000e+00> : vector<16xf32>
    %48 = vector.multi_reduction <add>, %47, %cst_21 [1] : vector<16x16xf32> to vector<16xf32>
    %49 = vector.shape_cast %48 : vector<16xf32> to vector<16x1xf32>
    %50 = tpu.reciprocal %49 {approx = true} : vector<16x1xf32> -> vector<16x1xf32>
    %51 = vector.broadcast %50 : vector<16x1xf32> to vector<16x16xf32>
    %52 = arith.mulf %47, %51 : vector<16x16xf32>
    %cst_22 = arith.constant dense<0.000000e+00> : vector<16x16xf32>
    %53 = tpu.matmul %52, %38, %cst_22 {dimension_numbers = #tpu.dot_dimension_numbers<[1], [0], [0], [1], [0, 0, 1, 1], [], []>} : vector<16x16xf32>, vector<16x16xf32>, vector<16x16xf32> -> vector<16x16xf32>
    %54 = vector.extract_strided_slice %33 {offsets = [0, 16], sizes = [16, 16], strides = [1, 1]} : vector<16x32xf32> to vector<16x16xf32>
    %55 = vector.extract_strided_slice %34 {offsets = [0, 16], sizes = [16, 16], strides = [1, 1]} : vector<16x32xf32> to vector<16x16xf32>
    %56 = vector.extract_strided_slice %35 {offsets = [0, 16], sizes = [16, 16], strides = [1, 1]} : vector<16x32xf32> to vector<16x16xf32>
    %cst_23 = arith.constant dense<0.000000e+00> : vector<16x16xf32>
    %57 = tpu.matmul %54, %55, %cst_23 {dimension_numbers = #tpu.dot_dimension_numbers<[1], [1], [0], [0], [0, 0, 1, 0], [], []>} : vector<16x16xf32>, vector<16x16xf32>, vector<16x16xf32> -> vector<16x16xf32>
    %cst_24 = arith.constant 2.500000e-01 : f32
    %58 = vector.broadcast %cst_24 : f32 to vector<16x16xf32>
    %59 = arith.mulf %57, %58 : vector<16x16xf32>
    %60 = arith.addf %59, %25 : vector<16x16xf32>
    %cst_25 = arith.constant dense<0xFF800000> : vector<16xf32>
    %61 = vector.multi_reduction <maximumf>, %60, %cst_25 [1] : vector<16x16xf32> to vector<16xf32>
    %62 = vector.shape_cast %61 : vector<16xf32> to vector<16x1xf32>
    %63 = vector.broadcast %62 : vector<16x1xf32> to vector<16x16xf32>
    %64 = arith.subf %60, %63 : vector<16x16xf32>
    %65 = math.exp %64 : vector<16x16xf32>
    %cst_26 = arith.constant dense<0.000000e+00> : vector<16xf32>
    %66 = vector.multi_reduction <add>, %65, %cst_26 [1] : vector<16x16xf32> to vector<16xf32>
    %67 = vector.shape_cast %66 : vector<16xf32> to vector<16x1xf32>
    %68 = tpu.reciprocal %67 {approx = true} : vector<16x1xf32> -> vector<16x1xf32>
    %69 = vector.broadcast %68 : vector<16x1xf32> to vector<16x16xf32>
    %70 = arith.mulf %65, %69 : vector<16x16xf32>
    %cst_27 = arith.constant dense<0.000000e+00> : vector<16x16xf32>
    %71 = tpu.matmul %70, %56, %cst_27 {dimension_numbers = #tpu.dot_dimension_numbers<[1], [0], [0], [1], [0, 0, 1, 1], [], []>} : vector<16x16xf32>, vector<16x16xf32>, vector<16x16xf32> -> vector<16x16xf32>
    %72 = tpu.concatenate %53, %71 in 1 : vector<16x16xf32>, vector<16x16xf32> -> vector<16x32xf32>
    %c0_28 = arith.constant 0 : index
    %c0_29 = arith.constant 0 : index
    %c0_30 = arith.constant 0 : index
    %73 = vector.load %arg6[%c0_28, %c0_29, %c0_30] : memref<2x32x32xf32, #tpu.memory_space<vmem>>, vector<1x32x32xf32>
    %74 = vector.shape_cast %73 : vector<1x32x32xf32> to vector<32x32xf32>
    %cst_31 = arith.constant dense<0.000000e+00> : vector<16x32xf32>
    %75 = tpu.matmul %72, %74, %cst_31 {dimension_numbers = #tpu.dot_dimension_numbers<[1], [0], [0], [1], [0, 0, 1, 1], [], []>} : vector<16x32xf32>, vector<32x32xf32>, vector<16x32xf32> -> vector<16x32xf32>
    %c0_32 = arith.constant 0 : index
    %c0_33 = arith.constant 0 : index
    %c0_34 = arith.constant 0 : index
    %76 = vector.load %arg7[%c0_32, %c0_33, %c0_34] : memref<2x1x32xf32, #tpu.memory_space<vmem>>, vector<1x1x32xf32>
    %77 = vector.shape_cast %76 : vector<1x1x32xf32> to vector<1x32xf32>
    %78 = vector.broadcast %77 : vector<1x32xf32> to vector<16x32xf32>
    %79 = arith.addf %75, %78 : vector<16x32xf32>
    %80 = arith.addf %24, %79 : vector<16x32xf32>
    %c0_35 = arith.constant 0 : index
    %c0_36 = arith.constant 0 : index
    %c0_37 = arith.constant 0 : index
    %81 = vector.load %arg8[%c0_35, %c0_36, %c0_37] : memref<2x1x32xf32, #tpu.memory_space<vmem>>, vector<1x1x32xf32>
    %82 = vector.shape_cast %81 : vector<1x1x32xf32> to vector<1x32xf32>
    %c0_38 = arith.constant 0 : index
    %c0_39 = arith.constant 0 : index
    %c0_40 = arith.constant 0 : index
    %83 = vector.load %arg9[%c0_38, %c0_39, %c0_40] : memref<2x1x32xf32, #tpu.memory_space<vmem>>, vector<1x1x32xf32>
    %84 = vector.shape_cast %83 : vector<1x1x32xf32> to vector<1x32xf32>
    %cst_41 = arith.constant dense<0.000000e+00> : vector<16xf32>
    %85 = vector.multi_reduction <add>, %80, %cst_41 [1] : vector<16x32xf32> to vector<16xf32>
    %86 = vector.shape_cast %85 : vector<16xf32> to vector<16x1xf32>
    %cst_42 = arith.constant 3.200000e+01 : f32
    %87 = vector.broadcast %cst_42 : f32 to vector<16x1xf32>
    %88 = arith.divf %86, %87 : vector<16x1xf32>
    %89 = vector.broadcast %88 : vector<16x1xf32> to vector<16x32xf32>
    %90 = arith.subf %80, %89 : vector<16x32xf32>
    %91 = arith.mulf %90, %90 : vector<16x32xf32>
    %cst_43 = arith.constant dense<0.000000e+00> : vector<16xf32>
    %92 = vector.multi_reduction <add>, %91, %cst_43 [1] : vector<16x32xf32> to vector<16xf32>
    %93 = vector.shape_cast %92 : vector<16xf32> to vector<16x1xf32>
    %cst_44 = arith.constant 3.200000e+01 : f32
    %94 = vector.broadcast %cst_44 : f32 to vector<16x1xf32>
    %95 = arith.divf %93, %94 : vector<16x1xf32>
    %96 = vector.broadcast %88 : vector<16x1xf32> to vector<16x32xf32>
    %97 = arith.subf %80, %96 : vector<16x32xf32>
    %cst_45 = arith.constant 9.99999996E-13 : f32
    %98 = vector.broadcast %cst_45 : f32 to vector<16x1xf32>
    %99 = arith.addf %95, %98 : vector<16x1xf32>
    %100 = math.rsqrt %99 : vector<16x1xf32>
    %101 = vector.broadcast %100 : vector<16x1xf32> to vector<16x32xf32>
    %102 = arith.mulf %97, %101 : vector<16x32xf32>
    %103 = vector.broadcast %82 : vector<1x32xf32> to vector<16x32xf32>
    %104 = arith.mulf %102, %103 : vector<16x32xf32>
    %105 = vector.broadcast %84 : vector<1x32xf32> to vector<16x32xf32>
    %106 = arith.addf %104, %105 : vector<16x32xf32>
    %c0_46 = arith.constant 0 : index
    %c0_47 = arith.constant 0 : index
    %c0_48 = arith.constant 0 : index
    %107 = vector.load %arg10[%c0_46, %c0_47, %c0_48] : memref<2x32x64xf32, #tpu.memory_space<vmem>>, vector<1x32x64xf32>
    %108 = vector.shape_cast %107 : vector<1x32x64xf32> to vector<32x64xf32>
    %cst_49 = arith.constant dense<0.000000e+00> : vector<16x64xf32>
    %109 = tpu.matmul %106, %108, %cst_49 {dimension_numbers = #tpu.dot_dimension_numbers<[1], [0], [0], [1], [0, 0, 1, 1], [], []>} : vector<16x32xf32>, vector<32x64xf32>, vector<16x64xf32> -> vector<16x64xf32>
    %c0_50 = arith.constant 0 : index
    %c0_51 = arith.constant 0 : index
    %c0_52 = arith.constant 0 : index
    %110 = vector.load %arg11[%c0_50, %c0_51, %c0_52] : memref<2x1x64xf32, #tpu.memory_space<vmem>>, vector<1x1x64xf32>
    %111 = vector.shape_cast %110 : vector<1x1x64xf32> to vector<1x64xf32>
    %112 = vector.broadcast %111 : vector<1x64xf32> to vector<16x64xf32>
    %113 = arith.addf %109, %112 : vector<16x64xf32>
    %cst_53 = arith.constant 5.000000e-01 : f32
    %114 = vector.broadcast %cst_53 : f32 to vector<16x64xf32>
    %115 = arith.mulf %114, %113 : vector<16x64xf32>
    %cst_54 = arith.constant 4.471500e-02 : f32
    %116 = vector.broadcast %cst_54 : f32 to vector<16x64xf32>
    %117 = arith.mulf %116, %113 : vector<16x64xf32>
    %118 = arith.mulf %117, %113 : vector<16x64xf32>
    %119 = arith.mulf %118, %113 : vector<16x64xf32>
    %120 = arith.addf %113, %119 : vector<16x64xf32>
    %cst_55 = arith.constant 0.797884583 : f32
    %121 = vector.broadcast %cst_55 : f32 to vector<16x64xf32>
    %122 = arith.mulf %121, %120 : vector<16x64xf32>
    %123 = math.tanh %122 : vector<16x64xf32>
    %cst_56 = arith.constant 1.000000e+00 : f32
    %124 = vector.broadcast %cst_56 : f32 to vector<16x64xf32>
    %125 = arith.addf %124, %123 : vector<16x64xf32>
    %126 = arith.mulf %115, %125 : vector<16x64xf32>
    %c0_57 = arith.constant 0 : index
    %c0_58 = arith.constant 0 : index
    %c0_59 = arith.constant 0 : index
    %127 = vector.load %arg12[%c0_57, %c0_58, %c0_59] : memref<2x64x32xf32, #tpu.memory_space<vmem>>, vector<1x64x32xf32>
    %128 = vector.shape_cast %127 : vector<1x64x32xf32> to vector<64x32xf32>
    %cst_60 = arith.constant dense<0.000000e+00> : vector<16x32xf32>
    %129 = tpu.matmul %126, %128, %cst_60 {dimension_numbers = #tpu.dot_dimension_numbers<[1], [0], [0], [1], [0, 0, 1, 1], [], []>} : vector<16x64xf32>, vector<64x32xf32>, vector<16x32xf32> -> vector<16x32xf32>
    %c0_61 = arith.constant 0 : index
    %c0_62 = arith.constant 0 : index
    %c0_63 = arith.constant 0 : index
    %130 = vector.load %arg13[%c0_61, %c0_62, %c0_63] : memref<2x1x32xf32, #tpu.memory_space<vmem>>, vector<1x1x32xf32>
    %131 = vector.shape_cast %130 : vector<1x1x32xf32> to vector<1x32xf32>
    %132 = vector.broadcast %131 : vector<1x32xf32> to vector<16x32xf32>
    %133 = arith.addf %129, %132 : vector<16x32xf32>
    %134 = arith.addf %106, %133 : vector<16x32xf32>
    %c0_64 = arith.constant 0 : index
    %c0_65 = arith.constant 0 : index
    %c0_66 = arith.constant 0 : index
    %135 = vector.load %arg14[%c0_64, %c0_65, %c0_66] : memref<2x1x32xf32, #tpu.memory_space<vmem>>, vector<1x1x32xf32>
    %136 = vector.shape_cast %135 : vector<1x1x32xf32> to vector<1x32xf32>
    %c0_67 = arith.constant 0 : index
    %c0_68 = arith.constant 0 : index
    %c0_69 = arith.constant 0 : index
    %137 = vector.load %arg15[%c0_67, %c0_68, %c0_69] : memref<2x1x32xf32, #tpu.memory_space<vmem>>, vector<1x1x32xf32>
    %138 = vector.shape_cast %137 : vector<1x1x32xf32> to vector<1x32xf32>
    %cst_70 = arith.constant dense<0.000000e+00> : vector<16xf32>
    %139 = vector.multi_reduction <add>, %134, %cst_70 [1] : vector<16x32xf32> to vector<16xf32>
    %140 = vector.shape_cast %139 : vector<16xf32> to vector<16x1xf32>
    %cst_71 = arith.constant 3.200000e+01 : f32
    %141 = vector.broadcast %cst_71 : f32 to vector<16x1xf32>
    %142 = arith.divf %140, %141 : vector<16x1xf32>
    %143 = vector.broadcast %142 : vector<16x1xf32> to vector<16x32xf32>
    %144 = arith.subf %134, %143 : vector<16x32xf32>
    %145 = arith.mulf %144, %144 : vector<16x32xf32>
    %cst_72 = arith.constant dense<0.000000e+00> : vector<16xf32>
    %146 = vector.multi_reduction <add>, %145, %cst_72 [1] : vector<16x32xf32> to vector<16xf32>
    %147 = vector.shape_cast %146 : vector<16xf32> to vector<16x1xf32>
    %cst_73 = arith.constant 3.200000e+01 : f32
    %148 = vector.broadcast %cst_73 : f32 to vector<16x1xf32>
    %149 = arith.divf %147, %148 : vector<16x1xf32>
    %150 = vector.broadcast %142 : vector<16x1xf32> to vector<16x32xf32>
    %151 = arith.subf %134, %150 : vector<16x32xf32>
    %cst_74 = arith.constant 9.99999996E-13 : f32
    %152 = vector.broadcast %cst_74 : f32 to vector<16x1xf32>
    %153 = arith.addf %149, %152 : vector<16x1xf32>
    %154 = math.rsqrt %153 : vector<16x1xf32>
    %155 = vector.broadcast %154 : vector<16x1xf32> to vector<16x32xf32>
    %156 = arith.mulf %151, %155 : vector<16x32xf32>
    %157 = vector.broadcast %136 : vector<1x32xf32> to vector<16x32xf32>
    %158 = arith.mulf %156, %157 : vector<16x32xf32>
    %159 = vector.broadcast %138 : vector<1x32xf32> to vector<16x32xf32>
    %160 = arith.addf %158, %159 : vector<16x32xf32>
    %c1 = arith.constant 1 : index
    %c0_75 = arith.constant 0 : index
    %c0_76 = arith.constant 0 : index
    %161 = vector.load %arg4[%c1, %c0_75, %c0_76] : memref<2x32x96xf32, #tpu.memory_space<vmem>>, vector<1x32x96xf32>
    %162 = vector.shape_cast %161 : vector<1x32x96xf32> to vector<32x96xf32>
    %cst_77 = arith.constant dense<0.000000e+00> : vector<16x96xf32>
    %163 = tpu.matmul %160, %162, %cst_77 {dimension_numbers = #tpu.dot_dimension_numbers<[1], [0], [0], [1], [0, 0, 1, 1], [], []>} : vector<16x32xf32>, vector<32x96xf32>, vector<16x96xf32> -> vector<16x96xf32>
    %c1_78 = arith.constant 1 : index
    %c0_79 = arith.constant 0 : index
    %c0_80 = arith.constant 0 : index
    %164 = vector.load %arg5[%c1_78, %c0_79, %c0_80] : memref<2x1x96xf32, #tpu.memory_space<vmem>>, vector<1x1x96xf32>
    %165 = vector.shape_cast %164 : vector<1x1x96xf32> to vector<1x96xf32>
    %166 = vector.broadcast %165 : vector<1x96xf32> to vector<16x96xf32>
    %167 = arith.addf %163, %166 : vector<16x96xf32>
    %168 = vector.extract_strided_slice %167 {offsets = [0, 0], sizes = [16, 32], strides = [1, 1]} : vector<16x96xf32> to vector<16x32xf32>
    %169 = vector.extract_strided_slice %167 {offsets = [0, 32], sizes = [16, 32], strides = [1, 1]} : vector<16x96xf32> to vector<16x32xf32>
    %170 = vector.extract_strided_slice %167 {offsets = [0, 64], sizes = [16, 32], strides = [1, 1]} : vector<16x96xf32> to vector<16x32xf32>
    %171 = vector.extract_strided_slice %168 {offsets = [0, 0], sizes = [16, 16], strides = [1, 1]} : vector<16x32xf32> to vector<16x16xf32>
    %172 = vector.extract_strided_slice %169 {offsets = [0, 0], sizes = [16, 16], strides = [1, 1]} : vector<16x32xf32> to vector<16x16xf32>
    %173 = vector.extract_strided_slice %170 {offsets = [0, 0], sizes = [16, 16], strides = [1, 1]} : vector<16x32xf32> to vector<16x16xf32>
    %cst_81 = arith.constant dense<0.000000e+00> : vector<16x16xf32>
    %174 = tpu.matmul %171, %172, %cst_81 {dimension_numbers = #tpu.dot_dimension_numbers<[1], [1], [0], [0], [0, 0, 1, 0], [], []>} : vector<16x16xf32>, vector<16x16xf32>, vector<16x16xf32> -> vector<16x16xf32>
    %cst_82 = arith.constant 2.500000e-01 : f32
    %175 = vector.broadcast %cst_82 : f32 to vector<16x16xf32>
    %176 = arith.mulf %174, %175 : vector<16x16xf32>
    %177 = arith.addf %176, %25 : vector<16x16xf32>
    %cst_83 = arith.constant dense<0xFF800000> : vector<16xf32>
    %178 = vector.multi_reduction <maximumf>, %177, %cst_83 [1] : vector<16x16xf32> to vector<16xf32>
    %179 = vector.shape_cast %178 : vector<16xf32> to vector<16x1xf32>
    %180 = vector.broadcast %179 : vector<16x1xf32> to vector<16x16xf32>
    %181 = arith.subf %177, %180 : vector<16x16xf32>
    %182 = math.exp %181 : vector<16x16xf32>
    %cst_84 = arith.constant dense<0.000000e+00> : vector<16xf32>
    %183 = vector.multi_reduction <add>, %182, %cst_84 [1] : vector<16x16xf32> to vector<16xf32>
    %184 = vector.shape_cast %183 : vector<16xf32> to vector<16x1xf32>
    %185 = tpu.reciprocal %184 {approx = true} : vector<16x1xf32> -> vector<16x1xf32>
    %186 = vector.broadcast %185 : vector<16x1xf32> to vector<16x16xf32>
    %187 = arith.mulf %182, %186 : vector<16x16xf32>
    %cst_85 = arith.constant dense<0.000000e+00> : vector<16x16xf32>
    %188 = tpu.matmul %187, %173, %cst_85 {dimension_numbers = #tpu.dot_dimension_numbers<[1], [0], [0], [1], [0, 0, 1, 1], [], []>} : vector<16x16xf32>, vector<16x16xf32>, vector<16x16xf32> -> vector<16x16xf32>
    %189 = vector.extract_strided_slice %168 {offsets = [0, 16], sizes = [16, 16], strides = [1, 1]} : vector<16x32xf32> to vector<16x16xf32>
    %190 = vector.extract_strided_slice %169 {offsets = [0, 16], sizes = [16, 16], strides = [1, 1]} : vector<16x32xf32> to vector<16x16xf32>
    %191 = vector.extract_strided_slice %170 {offsets = [0, 16], sizes = [16, 16], strides = [1, 1]} : vector<16x32xf32> to vector<16x16xf32>
    %cst_86 = arith.constant dense<0.000000e+00> : vector<16x16xf32>
    %192 = tpu.matmul %189, %190, %cst_86 {dimension_numbers = #tpu.dot_dimension_numbers<[1], [1], [0], [0], [0, 0, 1, 0], [], []>} : vector<16x16xf32>, vector<16x16xf32>, vector<16x16xf32> -> vector<16x16xf32>
    %cst_87 = arith.constant 2.500000e-01 : f32
    %193 = vector.broadcast %cst_87 : f32 to vector<16x16xf32>
    %194 = arith.mulf %192, %193 : vector<16x16xf32>
    %195 = arith.addf %194, %25 : vector<16x16xf32>
    %cst_88 = arith.constant dense<0xFF800000> : vector<16xf32>
    %196 = vector.multi_reduction <maximumf>, %195, %cst_88 [1] : vector<16x16xf32> to vector<16xf32>
    %197 = vector.shape_cast %196 : vector<16xf32> to vector<16x1xf32>
    %198 = vector.broadcast %197 : vector<16x1xf32> to vector<16x16xf32>
    %199 = arith.subf %195, %198 : vector<16x16xf32>
    %200 = math.exp %199 : vector<16x16xf32>
    %cst_89 = arith.constant dense<0.000000e+00> : vector<16xf32>
    %201 = vector.multi_reduction <add>, %200, %cst_89 [1] : vector<16x16xf32> to vector<16xf32>
    %202 = vector.shape_cast %201 : vector<16xf32> to vector<16x1xf32>
    %203 = tpu.reciprocal %202 {approx = true} : vector<16x1xf32> -> vector<16x1xf32>
    %204 = vector.broadcast %203 : vector<16x1xf32> to vector<16x16xf32>
    %205 = arith.mulf %200, %204 : vector<16x16xf32>
    %cst_90 = arith.constant dense<0.000000e+00> : vector<16x16xf32>
    %206 = tpu.matmul %205, %191, %cst_90 {dimension_numbers = #tpu.dot_dimension_numbers<[1], [0], [0], [1], [0, 0, 1, 1], [], []>} : vector<16x16xf32>, vector<16x16xf32>, vector<16x16xf32> -> vector<16x16xf32>
    %207 = tpu.concatenate %188, %206 in 1 : vector<16x16xf32>, vector<16x16xf32> -> vector<16x32xf32>
    %c1_91 = arith.constant 1 : index
    %c0_92 = arith.constant 0 : index
    %c0_93 = arith.constant 0 : index
    %208 = vector.load %arg6[%c1_91, %c0_92, %c0_93] : memref<2x32x32xf32, #tpu.memory_space<vmem>>, vector<1x32x32xf32>
    %209 = vector.shape_cast %208 : vector<1x32x32xf32> to vector<32x32xf32>
    %cst_94 = arith.constant dense<0.000000e+00> : vector<16x32xf32>
    %210 = tpu.matmul %207, %209, %cst_94 {dimension_numbers = #tpu.dot_dimension_numbers<[1], [0], [0], [1], [0, 0, 1, 1], [], []>} : vector<16x32xf32>, vector<32x32xf32>, vector<16x32xf32> -> vector<16x32xf32>
    %c1_95 = arith.constant 1 : index
    %c0_96 = arith.constant 0 : index
    %c0_97 = arith.constant 0 : index
    %211 = vector.load %arg7[%c1_95, %c0_96, %c0_97] : memref<2x1x32xf32, #tpu.memory_space<vmem>>, vector<1x1x32xf32>
    %212 = vector.shape_cast %211 : vector<1x1x32xf32> to vector<1x32xf32>
    %213 = vector.broadcast %212 : vector<1x32xf32> to vector<16x32xf32>
    %214 = arith.addf %210, %213 : vector<16x32xf32>
    %215 = arith.addf %160, %214 : vector<16x32xf32>
    %c1_98 = arith.constant 1 : index
    %c0_99 = arith.constant 0 : index
    %c0_100 = arith.constant 0 : index
    %216 = vector.load %arg8[%c1_98, %c0_99, %c0_100] : memref<2x1x32xf32, #tpu.memory_space<vmem>>, vector<1x1x32xf32>
    %217 = vector.shape_cast %216 : vector<1x1x32xf32> to vector<1x32xf32>
    %c1_101 = arith.constant 1 : index
    %c0_102 = arith.constant 0 : index
    %c0_103 = arith.constant 0 : index
    %218 = vector.load %arg9[%c1_101, %c0_102, %c0_103] : memref<2x1x32xf32, #tpu.memory_space<vmem>>, vector<1x1x32xf32>
    %219 = vector.shape_cast %218 : vector<1x1x32xf32> to vector<1x32xf32>
    %cst_104 = arith.constant dense<0.000000e+00> : vector<16xf32>
    %220 = vector.multi_reduction <add>, %215, %cst_104 [1] : vector<16x32xf32> to vector<16xf32>
    %221 = vector.shape_cast %220 : vector<16xf32> to vector<16x1xf32>
    %cst_105 = arith.constant 3.200000e+01 : f32
    %222 = vector.broadcast %cst_105 : f32 to vector<16x1xf32>
    %223 = arith.divf %221, %222 : vector<16x1xf32>
    %224 = vector.broadcast %223 : vector<16x1xf32> to vector<16x32xf32>
    %225 = arith.subf %215, %224 : vector<16x32xf32>
    %226 = arith.mulf %225, %225 : vector<16x32xf32>
    %cst_106 = arith.constant dense<0.000000e+00> : vector<16xf32>
    %227 = vector.multi_reduction <add>, %226, %cst_106 [1] : vector<16x32xf32> to vector<16xf32>
    %228 = vector.shape_cast %227 : vector<16xf32> to vector<16x1xf32>
    %cst_107 = arith.constant 3.200000e+01 : f32
    %229 = vector.broadcast %cst_107 : f32 to vector<16x1xf32>
    %230 = arith.divf %228, %229 : vector<16x1xf32>
    %231 = vector.broadcast %223 : vector<16x1xf32> to vector<16x32xf32>
    %232 = arith.subf %215, %231 : vector<16x32xf32>
    %cst_108 = arith.constant 9.99999996E-13 : f32
    %233 = vector.broadcast %cst_108 : f32 to vector<16x1xf32>
    %234 = arith.addf %230, %233 : vector<16x1xf32>
    %235 = math.rsqrt %234 : vector<16x1xf32>
    %236 = vector.broadcast %235 : vector<16x1xf32> to vector<16x32xf32>
    %237 = arith.mulf %232, %236 : vector<16x32xf32>
    %238 = vector.broadcast %217 : vector<1x32xf32> to vector<16x32xf32>
    %239 = arith.mulf %237, %238 : vector<16x32xf32>
    %240 = vector.broadcast %219 : vector<1x32xf32> to vector<16x32xf32>
    %241 = arith.addf %239, %240 : vector<16x32xf32>
    %c1_109 = arith.constant 1 : index
    %c0_110 = arith.constant 0 : index
    %c0_111 = arith.constant 0 : index
    %242 = vector.load %arg10[%c1_109, %c0_110, %c0_111] : memref<2x32x64xf32, #tpu.memory_space<vmem>>, vector<1x32x64xf32>
    %243 = vector.shape_cast %242 : vector<1x32x64xf32> to vector<32x64xf32>
    %cst_112 = arith.constant dense<0.000000e+00> : vector<16x64xf32>
    %244 = tpu.matmul %241, %243, %cst_112 {dimension_numbers = #tpu.dot_dimension_numbers<[1], [0], [0], [1], [0, 0, 1, 1], [], []>} : vector<16x32xf32>, vector<32x64xf32>, vector<16x64xf32> -> vector<16x64xf32>
    %c1_113 = arith.constant 1 : index
    %c0_114 = arith.constant 0 : index
    %c0_115 = arith.constant 0 : index
    %245 = vector.load %arg11[%c1_113, %c0_114, %c0_115] : memref<2x1x64xf32, #tpu.memory_space<vmem>>, vector<1x1x64xf32>
    %246 = vector.shape_cast %245 : vector<1x1x64xf32> to vector<1x64xf32>
    %247 = vector.broadcast %246 : vector<1x64xf32> to vector<16x64xf32>
    %248 = arith.addf %244, %247 : vector<16x64xf32>
    %cst_116 = arith.constant 5.000000e-01 : f32
    %249 = vector.broadcast %cst_116 : f32 to vector<16x64xf32>
    %250 = arith.mulf %249, %248 : vector<16x64xf32>
    %cst_117 = arith.constant 4.471500e-02 : f32
    %251 = vector.broadcast %cst_117 : f32 to vector<16x64xf32>
    %252 = arith.mulf %251, %248 : vector<16x64xf32>
    %253 = arith.mulf %252, %248 : vector<16x64xf32>
    %254 = arith.mulf %253, %248 : vector<16x64xf32>
    %255 = arith.addf %248, %254 : vector<16x64xf32>
    %cst_118 = arith.constant 0.797884583 : f32
    %256 = vector.broadcast %cst_118 : f32 to vector<16x64xf32>
    %257 = arith.mulf %256, %255 : vector<16x64xf32>
    %258 = math.tanh %257 : vector<16x64xf32>
    %cst_119 = arith.constant 1.000000e+00 : f32
    %259 = vector.broadcast %cst_119 : f32 to vector<16x64xf32>
    %260 = arith.addf %259, %258 : vector<16x64xf32>
    %261 = arith.mulf %250, %260 : vector<16x64xf32>
    %c1_120 = arith.constant 1 : index
    %c0_121 = arith.constant 0 : index
    %c0_122 = arith.constant 0 : index
    %262 = vector.load %arg12[%c1_120, %c0_121, %c0_122] : memref<2x64x32xf32, #tpu.memory_space<vmem>>, vector<1x64x32xf32>
    %263 = vector.shape_cast %262 : vector<1x64x32xf32> to vector<64x32xf32>
    %cst_123 = arith.constant dense<0.000000e+00> : vector<16x32xf32>
    %264 = tpu.matmul %261, %263, %cst_123 {dimension_numbers = #tpu.dot_dimension_numbers<[1], [0], [0], [1], [0, 0, 1, 1], [], []>} : vector<16x64xf32>, vector<64x32xf32>, vector<16x32xf32> -> vector<16x32xf32>
    %c1_124 = arith.constant 1 : index
    %c0_125 = arith.constant 0 : index
    %c0_126 = arith.constant 0 : index
    %265 = vector.load %arg13[%c1_124, %c0_125, %c0_126] : memref<2x1x32xf32, #tpu.memory_space<vmem>>, vector<1x1x32xf32>
    %266 = vector.shape_cast %265 : vector<1x1x32xf32> to vector<1x32xf32>
    %267 = vector.broadcast %266 : vector<1x32xf32> to vector<16x32xf32>
    %268 = arith.addf %264, %267 : vector<16x32xf32>
    %269 = arith.addf %241, %268 : vector<16x32xf32>
    %c1_127 = arith.constant 1 : index
    %c0_128 = arith.constant 0 : index
    %c0_129 = arith.constant 0 : index
    %270 = vector.load %arg14[%c1_127, %c0_128, %c0_129] : memref<2x1x32xf32, #tpu.memory_space<vmem>>, vector<1x1x32xf32>
    %271 = vector.shape_cast %270 : vector<1x1x32xf32> to vector<1x32xf32>
    %c1_130 = arith.constant 1 : index
    %c0_131 = arith.constant 0 : index
    %c0_132 = arith.constant 0 : index
    %272 = vector.load %arg15[%c1_130, %c0_131, %c0_132] : memref<2x1x32xf32, #tpu.memory_space<vmem>>, vector<1x1x32xf32>
    %273 = vector.shape_cast %272 : vector<1x1x32xf32> to vector<1x32xf32>
    %cst_133 = arith.constant dense<0.000000e+00> : vector<16xf32>
    %274 = vector.multi_reduction <add>, %269, %cst_133 [1] : vector<16x32xf32> to vector<16xf32>
    %275 = vector.shape_cast %274 : vector<16xf32> to vector<16x1xf32>
    %cst_134 = arith.constant 3.200000e+01 : f32
    %276 = vector.broadcast %cst_134 : f32 to vector<16x1xf32>
    %277 = arith.divf %275, %276 : vector<16x1xf32>
    %278 = vector.broadcast %277 : vector<16x1xf32> to vector<16x32xf32>
    %279 = arith.subf %269, %278 : vector<16x32xf32>
    %280 = arith.mulf %279, %279 : vector<16x32xf32>
    %cst_135 = arith.constant dense<0.000000e+00> : vector<16xf32>
    %281 = vector.multi_reduction <add>, %280, %cst_135 [1] : vector<16x32xf32> to vector<16xf32>
    %282 = vector.shape_cast %281 : vector<16xf32> to vector<16x1xf32>
    %cst_136 = arith.constant 3.200000e+01 : f32
    %283 = vector.broadcast %cst_136 : f32 to vector<16x1xf32>
    %284 = arith.divf %282, %283 : vector<16x1xf32>
    %285 = vector.broadcast %277 : vector<16x1xf32> to vector<16x32xf32>
    %286 = arith.subf %269, %285 : vector<16x32xf32>
    %cst_137 = arith.constant 9.99999996E-13 : f32
    %287 = vector.broadcast %cst_137 : f32 to vector<16x1xf32>
    %288 = arith.addf %284, %287 : vector<16x1xf32>
    %289 = math.rsqrt %288 : vector<16x1xf32>
    %290 = vector.broadcast %289 : vector<16x1xf32> to vector<16x32xf32>
    %291 = arith.mulf %286, %290 : vector<16x32xf32>
    %292 = vector.broadcast %271 : vector<1x32xf32> to vector<16x32xf32>
    %293 = arith.mulf %291, %292 : vector<16x32xf32>
    %294 = vector.broadcast %273 : vector<1x32xf32> to vector<16x32xf32>
    %295 = arith.addf %293, %294 : vector<16x32xf32>
    %c0_138 = arith.constant 0 : index
    %c0_139 = arith.constant 0 : index
    %296 = vector.load %arg16[%c0_138, %c0_139] : memref<32x32xf32, #tpu.memory_space<vmem>>, vector<32x32xf32>
    %cst_140 = arith.constant dense<0.000000e+00> : vector<16x32xf32>
    %297 = tpu.matmul %295, %296, %cst_140 {dimension_numbers = #tpu.dot_dimension_numbers<[1], [0], [0], [1], [0, 0, 1, 1], [], []>} : vector<16x32xf32>, vector<32x32xf32>, vector<16x32xf32> -> vector<16x32xf32>
    %c0_141 = arith.constant 0 : index
    %c0_142 = arith.constant 0 : index
    %298 = vector.load %arg17[%c0_141, %c0_142] : memref<1x32xf32, #tpu.memory_space<vmem>>, vector<1x32xf32>
    %299 = vector.broadcast %298 : vector<1x32xf32> to vector<16x32xf32>
    %300 = arith.addf %297, %299 : vector<16x32xf32>
    %301 = math.tanh %300 : vector<16x32xf32>
    %c0_143 = arith.constant 0 : index
    %c0_144 = arith.constant 0 : index
    %302 = vector.load %arg18[%c0_143, %c0_144] : memref<32x128xf32, #tpu.memory_space<vmem>>, vector<32x128xf32>
    %cst_145 = arith.constant dense<0.000000e+00> : vector<16x128xf32>
    %303 = tpu.matmul %301, %302, %cst_145 {dimension_numbers = #tpu.dot_dimension_numbers<[1], [0], [0], [1], [0, 0, 1, 1], [], []>} : vector<16x32xf32>, vector<32x128xf32>, vector<16x128xf32> -> vector<16x128xf32>
    %c0_146 = arith.constant 0 : index
    %c0_147 = arith.constant 0 : index
    %304 = vector.load %arg19[%c0_146, %c0_147] : memref<1x128xf32, #tpu.memory_space<vmem>>, vector<1x128xf32>
    %305 = vector.broadcast %304 : vector<1x128xf32> to vector<16x128xf32>
    %306 = arith.addf %303, %305 : vector<16x128xf32>
    %c0_148 = arith.constant 0 : index
    %c0_149 = arith.constant 0 : index
    %307 = vector.load %arg20[%c0_148, %c0_149] : memref<16x128xf32, #tpu.memory_space<vmem>>, vector<16x128xf32>
    tpu.vector_store %arg20[%c0_148, %c0_149], %306 {strides = array<i32>} : memref<16x128xf32, #tpu.memory_space<vmem>>, vector<16x128xf32>,
    return
  }
}

</mosaic_0001>

<llo_original>
// kernel: tpu_custom_call.1
$region0: #{tpu_custom_call.1}
  #allocation0 [shape = 'u32[]', space=smem, size = 0x4, offset = 0x4, fixed_abs, tag = 'smem constant byte address 0x4 - core index']
  #allocation1 [shape = 'u32[72,128]{1,0:T(1,128)}', space=vmem, size = 0x9000, scoped, tag = 'internal scratch']
  %s0 = inlined_call_operand.hbm [shape: f32[16,32], index: 0, kind: input, shape index: {}]
  %s1 = inlined_call_operand.hbm [shape: f32[16,16], index: 1, kind: input, shape index: {}]
  %s2 = inlined_call_operand.hbm [shape: f32[1,32], index: 2, kind: input, shape index: {}]
  %s3 = inlined_call_operand.hbm [shape: f32[1,32], index: 3, kind: input, shape index: {}]
  %s4 = inlined_call_operand.vmem [shape: f32[2,32,96], index: 4, kind: input, shape index: {}]
  %s5 = inlined_call_operand.vmem [shape: f32[2,1,96], index: 5, kind: input, shape index: {}]
  %s6 = inlined_call_operand.vmem [shape: f32[2,32,32], index: 6, kind: input, shape index: {}]
  %s7 = inlined_call_operand.vmem [shape: f32[2,1,32], index: 7, kind: input, shape index: {}]
  %s8 = inlined_call_operand.hbm [shape: f32[2,1,32], index: 8, kind: input, shape index: {}]
  %s9 = inlined_call_operand.vmem [shape: f32[2,1,32], index: 9, kind: input, shape index: {}]
  %s10 = inlined_call_operand.vmem [shape: f32[2,32,64], index: 10, kind: input, shape index: {}]
  %s11 = inlined_call_operand.vmem [shape: f32[2,1,64], index: 11, kind: input, shape index: {}]
  %s12 = inlined_call_operand.vmem [shape: f32[2,64,32], index: 12, kind: input, shape index: {}]
  %s13 = inlined_call_operand.vmem [shape: f32[2,1,32], index: 13, kind: input, shape index: {}]
  %s14 = inlined_call_operand.hbm [shape: f32[2,1,32], index: 14, kind: input, shape index: {}]
  %s15 = inlined_call_operand.vmem [shape: f32[2,1,32], index: 15, kind: input, shape index: {}]
  %s16 = inlined_call_operand.hbm [shape: f32[32,32], index: 16, kind: input, shape index: {}]
  %s17 = inlined_call_operand.vmem [shape: f32[1,32], index: 17, kind: input, shape index: {}]
  %s18 = inlined_call_operand.hbm [shape: f32[32,128], index: 18, kind: input, shape index: {}]
  %s19 = inlined_call_operand.vmem [shape: f32[1,128], index: 19, kind: input, shape index: {}]
  %s20 = inlined_call_operand.hbm [shape: f32[16,128], index: 20, kind: output, shape index: {}]
  %s21 = sld [smem:[#allocation0]]
  $region122: #{tpu_custom_call.1} parent=0
    _
  %s23 = ssub.s32 1, %s21
  %s24 = scalar_select 0, %s23, %s21
  $region1: #{tpu_custom_call.1} parent=0
    #allocation2 [shape = 'u8[8192]{0}', space=vmem, size = 0x2000, scoped, tag = 'input window, operand 0, single buffered']
    #allocation3 [shape = 's32[1]{0}', space=sflag, size = 0x4, scoped, tag = 'scoped memory for tpu_custom_call.1']
    #allocation4 [shape = 's32[1]{0}', space=sflag, size = 0x4, scoped, tag = 'scoped memory for tpu_custom_call.1']
    #allocation5 [shape = 'u8[8192]{0}', space=vmem, size = 0x2000, scoped, tag = 'input window, operand 1, single buffered']
    #allocation6 [shape = 's32[1]{0}', space=sflag, size = 0x4, scoped, tag = 'scoped memory for tpu_custom_call.1']
    #allocation7 [shape = 'u8[512]{0}', space=vmem, size = 0x400, scoped, tag = 'input window, operand 2, single buffered']
    #allocation8 [shape = 'u8[512]{0}', space=vmem, size = 0x400, scoped, tag = 'input window, operand 3, single buffered']
    #allocation9 [shape = 's32[1]{0}', space=sflag, size = 0x4, scoped, tag = 'scoped memory for tpu_custom_call.1']
    #allocation10 [shape = 'u8[1024]{0}', space=vmem, size = 0x400, scoped, tag = 'input window, operand 8, single buffered']
    #allocation11 [shape = 'u8[1024]{0}', space=vmem, size = 0x400, scoped, tag = 'input window, operand 14, single buffered']
    #allocation12 [shape = 's32[1]{0}', space=sflag, size = 0x4, scoped, tag = 'scoped memory for tpu_custom_call.1']
    #allocation13 [shape = 'u8[16384]{0}', space=vmem, size = 0x4000, scoped, tag = 'input window, operand 16, single buffered']
    #allocation14 [shape = 'u8[16384]{0}', space=vmem, size = 0x4000, scoped, tag = 'input window, operand 18, single buffered']
    #allocation15 [shape = 's32[1]{0}', space=sflag, size = 0x4, scoped, tag = 'scoped memory for tpu_custom_call.1']
    #allocation16 [shape = 'u8[8192]{0}', space=vmem, size = 0x2000, scoped, tag = 'output window, operand 0, single buffered']
    %25 = vsyncpa [#allocation3], 0
    %26 = vsyncpa [#allocation6], 0
    %27 = vsyncpa [#allocation9], 0
    %28 = vsyncpa [#allocation12], 0
    %29 = vsyncpa [#allocation15], 0
    %30 = vsyncpa [#allocation4], 0
    // Predicated region
    $region2: #{tpu_custom_call.1} parent=1 // pred_check
      _
    $region3: #{tpu_custom_call.1} parent=1 // pred_check_branch
      %32 = sbr.rel (0) target = $region5
    $region4: #{tpu_custom_call.1} parent=1 // pred_region
      %34 = vsyncadd [#allocation3], 0
      %s35 = sshll.u32 %s0, 4
      %s36 = int_to_ptr.hbm [resolvable:$true] %s35
      %s37 = sshll.u32 [#allocation2], 4
      %s38 = int_to_ptr.vmem [resolvable:$true] %s37
      %43 = dma.hbm_to_vmem [thread:$0]  %s36, 256, %s38, [#allocation3], 128, 128, 8
    $region5: #{tpu_custom_call.1} parent=1 // pred_fallthru
      _
    // Predicated region
    $region6: #{tpu_custom_call.1} parent=1 // pred_check
      _
    $region7: #{tpu_custom_call.1} parent=1 // pred_check_branch
      %45 = sbr.rel (0) target = $region9
    $region8: #{tpu_custom_call.1} parent=1 // pred_region
      %47 = vsyncadd [#allocation6], 0
      %s48 = sshll.u32 %s1, 4
      %s49 = int_to_ptr.hbm [resolvable:$true] %s48
      %s50 = sshll.u32 [#allocation5], 4
      %s51 = int_to_ptr.vmem [resolvable:$true] %s50
      %56 = dma.hbm_to_vmem [thread:$0]  %s49, 256, %s51, [#allocation6], 128, 128, 8
    $region9: #{tpu_custom_call.1} parent=1 // pred_fallthru
      _
    // Predicated region
    $region10: #{tpu_custom_call.1} parent=1 // pred_check
      _
    $region11: #{tpu_custom_call.1} parent=1 // pred_check_branch
      %58 = sbr.rel (0) target = $region13
    $region12: #{tpu_custom_call.1} parent=1 // pred_region
      %60 = vsyncadd [#allocation6], 0
      %s62 = sshll.u32 %s2, 4
      %s63 = int_to_ptr.hbm [resolvable:$true] %s62
      %s64 = sshll.u32 [#allocation7], 4
      %s65 = int_to_ptr.vmem [resolvable:$true] %s64
      %67 = dma.hbm_to_vmem [thread:$0]  %s63, 16, %s65, [#allocation6]
    $region13: #{tpu_custom_call.1} parent=1 // pred_fallthru
      _
    // Predicated region
    $region14: #{tpu_custom_call.1} parent=1 // pred_check
      _
    $region15: #{tpu_custom_call.1} parent=1 // pred_check_branch
      %69 = sbr.rel (0) target = $region17
    $region16: #{tpu_custom_call.1} parent=1 // pred_region
      %71 = vsyncadd [#allocation9], 0
      %s73 = sshll.u32 %s3, 4
      %s74 = int_to_ptr.hbm [resolvable:$true] %s73
      %s75 = sshll.u32 [#allocation8], 4
      %s76 = int_to_ptr.vmem [resolvable:$true] %s75
      %78 = dma.hbm_to_vmem [thread:$0]  %s74, 16, %s76, [#allocation9]
    $region17: #{tpu_custom_call.1} parent=1 // pred_fallthru
      _
    // Predicated region
    $region18: #{tpu_custom_call.1} parent=1 // pred_check
      _
    $region19: #{tpu_custom_call.1} parent=1 // pred_check_branch
      %80 = sbr.rel (0) target = $region21
    $region20: #{tpu_custom_call.1} parent=1 // pred_region
      _
    $region21: #{tpu_custom_call.1} parent=1 // pred_fallthru
      _
    // Predicated region
    $region22: #{tpu_custom_call.1} parent=1 // pred_check
      _
    $region23: #{tpu_custom_call.1} parent=1 // pred_check_branch
      %82 = sbr.rel (0) target = $region25
    $region24: #{tpu_custom_call.1} parent=1 // pred_region
      _
    $region25: #{tpu_custom_call.1} parent=1 // pred_fallthru
      _
    // Predicated region
    $region26: #{tpu_custom_call.1} parent=1 // pred_check
      _
    $region27: #{tpu_custom_call.1} parent=1 // pred_check_branch
      %84 = sbr.rel (0) target = $region29
    $region28: #{tpu_custom_call.1} parent=1 // pred_region
      _
    $region29: #{tpu_custom_call.1} parent=1 // pred_fallthru
      _
    // Predicated region
    $region30: #{tpu_custom_call.1} parent=1 // pred_check
      _
    $region31: #{tpu_custom_call.1} parent=1 // pred_check_branch
      %86 = sbr.rel (0) target = $region33
    $region32: #{tpu_custom_call.1} parent=1 // pred_region
      _
    $region33: #{tpu_custom_call.1} parent=1 // pred_fallthru
      _
    // Predicated region
    $region34: #{tpu_custom_call.1} parent=1 // pred_check
      _
    $region35: #{tpu_custom_call.1} parent=1 // pred_check_branch
      %88 = sbr.rel (0) target = $region37
    $region36: #{tpu_custom_call.1} parent=1 // pred_region
      %90 = vsyncadd [#allocation9], 0
      %s91 = sshll.u32 %s8, 4
      %s92 = int_to_ptr.hbm [resolvable:$true] %s91
      %s93 = sshll.u32 [#allocation10], 4
      %s94 = int_to_ptr.vmem [resolvable:$true] %s93
      %99 = dma.hbm_to_vmem [thread:$0]  %s92, 32, %s94, [#allocation9], 16, 16, 1
    $region37: #{tpu_custom_call.1} parent=1 // pred_fallthru
      _
    // Predicated region
    $region38: #{tpu_custom_call.1} parent=1 // pred_check
      _
    $region39: #{tpu_custom_call.1} parent=1 // pred_check_branch
      %101 = sbr.rel (0) target = $region41
    $region40: #{tpu_custom_call.1} parent=1 // pred_region
      _
    $region41: #{tpu_custom_call.1} parent=1 // pred_fallthru
      _
    // Predicated region
    $region42: #{tpu_custom_call.1} parent=1 // pred_check
      _
    $region43: #{tpu_custom_call.1} parent=1 // pred_check_branch
      %103 = sbr.rel (0) target = $region45
    $region44: #{tpu_custom_call.1} parent=1 // pred_region
      _
    $region45: #{tpu_custom_call.1} parent=1 // pred_fallthru
      _
    // Predicated region
    $region46: #{tpu_custom_call.1} parent=1 // pred_check
      _
    $region47: #{tpu_custom_call.1} parent=1 // pred_check_branch
      %105 = sbr.rel (0) target = $region49
    $region48: #{tpu_custom_call.1} parent=1 // pred_region
      _
    $region49: #{tpu_custom_call.1} parent=1 // pred_fallthru
      _
    // Predicated region
    $region50: #{tpu_custom_call.1} parent=1 // pred_check
      _
    $region51: #{tpu_custom_call.1} parent=1 // pred_check_branch
      %107 = sbr.rel (0) target = $region53
    $region52: #{tpu_custom_call.1} parent=1 // pred_region
      _
    $region53: #{tpu_custom_call.1} parent=1 // pred_fallthru
      _
    // Predicated region
    $region54: #{tpu_custom_call.1} parent=1 // pred_check
      _
    $region55: #{tpu_custom_call.1} parent=1 // pred_check_branch
      %109 = sbr.rel (0) target = $region57
    $region56: #{tpu_custom_call.1} parent=1 // pred_region
      _
    $region57: #{tpu_custom_call.1} parent=1 // pred_fallthru
      _
    // Predicated region
    $region58: #{tpu_custom_call.1} parent=1 // pred_check
      _
    $region59: #{tpu_custom_call.1} parent=1 // pred_check_branch
      %111 = sbr.rel (0) target = $region61
    $region60: #{tpu_custom_call.1} parent=1 // pred_region
      %113 = vsyncadd [#allocation12], 0
      %s114 = sshll.u32 %s14, 4
      %s115 = int_to_ptr.hbm [resolvable:$true] %s114
      %s116 = sshll.u32 [#allocation11], 4
      %s117 = int_to_ptr.vmem [resolvable:$true] %s116
      %122 = dma.hbm_to_vmem [thread:$0]  %s115, 32, %s117, [#allocation12], 16, 16, 1
    $region61: #{tpu_custom_call.1} parent=1 // pred_fallthru
      _
    // Predicated region
    $region62: #{tpu_custom_call.1} parent=1 // pred_check
      _
    $region63: #{tpu_custom_call.1} parent=1 // pred_check_branch
      %124 = sbr.rel (0) target = $region65
    $region64: #{tpu_custom_call.1} parent=1 // pred_region
      _
    $region65: #{tpu_custom_call.1} parent=1 // pred_fallthru
      _
    // Predicated region
    $region66: #{tpu_custom_call.1} parent=1 // pred_check
      _
    $region67: #{tpu_custom_call.1} parent=1 // pred_check_branch
      %126 = sbr.rel (0) target = $region69
    $region68: #{tpu_custom_call.1} parent=1 // pred_region
      %128 = vsyncadd [#allocation12], 0
      %s129 = sshll.u32 %s16, 4
      %s130 = int_to_ptr.hbm [resolvable:$true] %s129
      %s131 = sshll.u32 [#allocation13], 4
      %s132 = int_to_ptr.vmem [resolvable:$true] %s131
      %137 = dma.hbm_to_vmem [thread:$0]  %s130, 512, %s132, [#allocation12], 128, 128, 8
    $region69: #{tpu_custom_call.1} parent=1 // pred_fallthru
      _
    // Predicated region
    $region70: #{tpu_custom_call.1} parent=1 // pred_check
      _
    $region71: #{tpu_custom_call.1} parent=1 // pred_check_branch
      %139 = sbr.rel (0) target = $region73
    $region72: #{tpu_custom_call.1} parent=1 // pred_region
      _
    $region73: #{tpu_custom_call.1} parent=1 // pred_fallthru
      _
    // Predicated region
    $region74: #{tpu_custom_call.1} parent=1 // pred_check
      _
    $region75: #{tpu_custom_call.1} parent=1 // pred_check_branch
      %141 = sbr.rel (0) target = $region77
    $region76: #{tpu_custom_call.1} parent=1 // pred_region
      %143 = vsyncadd [#allocation15], 0
      %s144 = sshll.u32 %s18, 4
      %s145 = int_to_ptr.hbm [resolvable:$true] %s144
      %s146 = sshll.u32 [#allocation14], 4
      %s147 = int_to_ptr.vmem [resolvable:$true] %s146
      %152 = dma.hbm_to_vmem [thread:$0]  %s145, 512, %s147, [#allocation15], 128, 128, 8
    $region77: #{tpu_custom_call.1} parent=1 // pred_fallthru
      _
    // Predicated region
    $region78: #{tpu_custom_call.1} parent=1 // pred_check
      _
    $region79: #{tpu_custom_call.1} parent=1 // pred_check_branch
      %154 = sbr.rel (0) target = $region81
    $region80: #{tpu_custom_call.1} parent=1 // pred_region
      _
    $region81: #{tpu_custom_call.1} parent=1 // pred_fallthru
      _
    // Predicated region
    $region82: #{tpu_custom_call.1} parent=1 // pred_check
      _
    $region83: #{tpu_custom_call.1} parent=1 // pred_check_branch
      %156 = sbr.rel (0) target = $region85
    $region84: #{tpu_custom_call.1} parent=1 // pred_region
      %158 = dma.done [#allocation3], 256
    $region85: #{tpu_custom_call.1} parent=1 // pred_fallthru
      _
    // Predicated region
    $region86: #{tpu_custom_call.1} parent=1 // pred_check
      _
    $region87: #{tpu_custom_call.1} parent=1 // pred_check_branch
      %160 = sbr.rel (0) target = $region89
    $region88: #{tpu_custom_call.1} parent=1 // pred_region
      %162 = dma.done [#allocation6], 256
    $region89: #{tpu_custom_call.1} parent=1 // pred_fallthru
      _
    // Predicated region
    $region90: #{tpu_custom_call.1} parent=1 // pred_check
      _
    $region91: #{tpu_custom_call.1} parent=1 // pred_check_branch
      %164 = sbr.rel (0) target = $region93
    $region92: #{tpu_custom_call.1} parent=1 // pred_region
      %166 = dma.done [#allocation6], 16
    $region93: #{tpu_custom_call.1} parent=1 // pred_fallthru
      _
    // Predicated region
    $region94: #{tpu_custom_call.1} parent=1 // pred_check
      _
    $region95: #{tpu_custom_call.1} parent=1 // pred_check_branch
      %168 = sbr.rel (0) target = $region97
    $region96: #{tpu_custom_call.1} parent=1 // pred_region
      %170 = dma.done [#allocation9], 16
    $region97: #{tpu_custom_call.1} parent=1 // pred_fallthru
      _
    // Predicated region
    $region98: #{tpu_custom_call.1} parent=1 // pred_check
      _
    $region99: #{tpu_custom_call.1} parent=1 // pred_check_branch
      %172 = sbr.rel (0) target = $region101
    $region100: #{tpu_custom_call.1} parent=1 // pred_region
      %174 = dma.done [#allocation9], 32
    $region101: #{tpu_custom_call.1} parent=1 // pred_fallthru
      _
    // Predicated region
    $region102: #{tpu_custom_call.1} parent=1 // pred_check
      _
    $region103: #{tpu_custom_call.1} parent=1 // pred_check_branch
      %176 = sbr.rel (0) target = $region105
    $region104: #{tpu_custom_call.1} parent=1 // pred_region
      %178 = dma.done [#allocation12], 32
    $region105: #{tpu_custom_call.1} parent=1 // pred_fallthru
      _
    // Predicated region
    $region106: #{tpu_custom_call.1} parent=1 // pred_check
      _
    $region107: #{tpu_custom_call.1} parent=1 // pred_check_branch
      %180 = sbr.rel (0) target = $region109
    $region108: #{tpu_custom_call.1} parent=1 // pred_region
      %182 = dma.done [#allocation12], 512
    $region109: #{tpu_custom_call.1} parent=1 // pred_fallthru
      _
    // Predicated region
    $region110: #{tpu_custom_call.1} parent=1 // pred_check
      _
    $region111: #{tpu_custom_call.1} parent=1 // pred_check_branch
      %184 = sbr.rel (0) target = $region113
    $region112: #{tpu_custom_call.1} parent=1 // pred_region
      %186 = dma.done [#allocation15], 512
    $region113: #{tpu_custom_call.1} parent=1 // pred_fallthru
      _
    %v187 = vld [vmem:[#allocation2] sm:$0xff]
    %v188 = vld [vmem:[#allocation2 + $0x8] sm:$0xff]
    %v189 = vld [vmem:[#allocation7] sm:$0x1]
    %v190 = vld [vmem:[#allocation8] sm:$0x1]
    %vm191 = vcmask 261120
    %v192 = vsel %vm191, %v187, 0.0
    %193 = vadd.xlane.f32.xlu0 %v192
    %v194 = vpop.xlane.xlu0 %193
    %v195 = vsel %vm191, %v188, 0.0
    %196 = vadd.xlane.f32.xlu0 %v195
    %v197 = vpop.xlane.xlu0 %196
    %v198 = vrcp.pop 32.0
    %v199 = vmul.f32 32.0, %v198
    %v200 = vsub.f32 1.0, %v199
    %v201 = vmul.f32 %v198, %v200
    %v202 = vadd.f32 %v198, %v201
    %vm203 = vweird.f32 %v198
    %v204 = vsel %vm203, %v198, %v202
    %v205 = vmul.f32 %v194, %v204
    %v206 = vmul.f32 %v197, %v204
    %v207 = vsub.f32 %v187, %v205
    %v208 = vsub.f32 %v188, %v206
    %v209 = vmul.f32 %v207, %v207
    %v210 = vmul.f32 %v208, %v208
    %v211 = vsel %vm191, %v209, 0.0
    %212 = vadd.xlane.f32.xlu0 %v211
    %v213 = vpop.xlane.xlu0 %212
    %v214 = vsel %vm191, %v210, 0.0
    %215 = vadd.xlane.f32.xlu0 %v214
    %v216 = vpop.xlane.xlu0 %215
    %v217 = vmul.f32 %v213, %v204
    %v218 = vmul.f32 %v216, %v204
    %v219 = vadd.f32 %v217, 1e-12
    %v220 = vadd.f32 %v218, 1e-12
    %v221 = vrsqrt.pop %v219
    %v222 = vmul.f32 %v221, %v219
    %v223 = vmul.f32 %v222, %v221
    %v224 = vmul.f32 0.5, %v223
    %v225 = vsub.f32 1.5, %v224
    %v226 = vmul.f32 %v221, %v225
    %vm227 = vweird.f32 %v219
    %vm228 = vweird.f32 %v221
    %vm229 = vmor %vm227, %vm228
    %v230 = vsel %vm229, %v221, %v226
    %v231 = vrsqrt.pop %v220
    %v232 = vmul.f32 %v231, %v220
    %v233 = vmul.f32 %v232, %v231
    %v234 = vmul.f32 0.5, %v233
    %v235 = vsub.f32 1.5, %v234
    %v236 = vmul.f32 %v231, %v235
    %vm237 = vweird.f32 %v220
    %vm238 = vweird.f32 %v231
    %vm239 = vmor %vm237, %vm238
    %v240 = vsel %vm239, %v231, %v236
    %v241 = vmul.f32 %v207, %v230
    %v242 = vmul.f32 %v208, %v240
    %v244 = vperm.slane %v189, 0
    %v246 = vmul.f32 %v241, %v244
    %v247 = vmul.f32 %v242, %v244
    %v249 = vperm.slane %v190, 0
    %v251 = vadd.f32 %v246, %v249
    %v252 = vadd.f32 %v247, %v249
    %v253 = vld [vmem:[#allocation5] sm:$0xff]
    %v254 = vld [vmem:[#allocation5 + $0x8] sm:$0xff]
    %v255 = vld [vmem:[%s4] sm:$0xff]
    %v256 = vld [vmem:[%s4 + $0x8] sm:$0xff]
    %v257 = vld [vmem:[%s4 + $0x10] sm:$0xff]
    %v258 = vld [vmem:[%s4 + $0x18] sm:$0xff]
    %v259 = vld [vmem:[%s5] sm:$0x1]
    %v261 = vperm.slane %v259, 0
    %v264 = vsel %vm191, %v251, 0
    %v267 = vsel %vm191, %v252, 0
    %269 = vmatpush.msra.mxu0 0.0
    %270 = vmatpush.msra.mxu0 0.0
    %271 = vmatpush.msra.mxu0 0.0
    %272 = vmatpush.msra.mxu0 0.0
    %273 = vmatpush.msra.mxu0 0.0
    %274 = vmatpush.msra.mxu0 0.0
    %275 = vmatpush.msra.mxu0 0.0
    %276 = vmatpush.msra.mxu0 0.0
    %277 = vmatpush.msra.mxu0 0.0
    %278 = vmatpush.msra.mxu0 0.0
    %279 = vmatpush.msra.mxu0 0.0
    %280 = vmatpush.msra.mxu0 0.0
    %281 = vmatpush.msra.mxu0 %v258
    %282 = vmatpush.msra.mxu0 %v257
    %283 = vmatpush.msra.mxu0 %v256
    %284 = vmatpush.msra.mxu0 %v255
    %285 = vmatmul.f32.gmra.mxu0 %v264
    %v286 = vpop.f32.mrf.mxu0
    %v287 = vadd.f32 %v261, %v286
    %288 = vmatmul.f32.gmra.mxu0 %v267
    %v289 = vpop.f32.mrf.mxu0
    %v290 = vadd.f32 %v261, %v289
    %291 = vdwg.mxu0
    %294 = vrot.lane.b32.xlu0 %v287, 96
    %v295 = vpop.permute.xlu0 %294
    %296 = vrot.lane.b32.xlu0 %v290, 96
    %v297 = vpop.permute.xlu0 %296
    %vm298 = vcmask 130048
    %v299 = vsel %vm298, %v287, 0
    %v301 = vsel %vm298, %v290, 0
    %v303 = vsel %vm298, %v295, 0
    %v305 = vsel %vm298, %v297, 0
    %307 = vmatpush.xpose.msra.mxu0 0.0
    %308 = vmatpush.xpose.msra.mxu0 0.0
    %309 = vmatpush.xpose.msra.mxu0 0.0
    %310 = vmatpush.xpose.msra.mxu0 0.0
    %311 = vmatpush.xpose.msra.mxu0 0.0
    %312 = vmatpush.xpose.msra.mxu0 0.0
    %313 = vmatpush.xpose.msra.mxu0 0.0
    %314 = vmatpush.xpose.msra.mxu0 0.0
    %315 = vmatpush.xpose.msra.mxu0 0.0
    %316 = vmatpush.xpose.msra.mxu0 0.0
    %317 = vmatpush.xpose.msra.mxu0 0.0
    %318 = vmatpush.xpose.msra.mxu0 0.0
    %319 = vmatpush.xpose.msra.mxu0 0.0
    %320 = vmatpush.xpose.msra.mxu0 0.0
    %321 = vmatpush.xpose.msra.mxu0 %v305
    %322 = vmatpush.xpose.msra.mxu0 %v303
    %323 = vmatmul.f32.gmra.mxu0 %v299
    %v324 = vpop.f32.mrf.mxu0
    %v325 = vadd.f32 0.0, %v324
    %326 = vmatmul.f32.gmra.mxu0 %v301
    %v327 = vpop.f32.mrf.mxu0
    %v328 = vadd.f32 0.0, %v327
    %329 = vdwg.mxu0
    %v330 = vmul.f32 %v325, 0.25
    %v331 = vmul.f32 %v328, 0.25
    %v332 = vadd.f32 %v330, %v253
    %v333 = vadd.f32 %v331, %v254
    %v334 = vsel %vm298, %v332, -inf
    %335 = vmax.xlane.f32.xlu0 %v334
    %v336 = vpop.xlane.xlu0 %335
    %v337 = vsel %vm298, %v333, -inf
    %338 = vmax.xlane.f32.xlu0 %v337
    %v339 = vpop.xlane.xlu0 %338
    %v340 = vsub.f32 %v332, %v336
    %v341 = vsub.f32 %v333, %v339
    %v342 = vmul.f32 %v340, 1.442695
    %v343 = vpow.pop %v342
    %v344 = vmul.f32 %v341, 1.442695
    %v345 = vpow.pop %v344
    %v346 = vsel %vm298, %v343, 0.0
    %347 = vadd.xlane.f32.xlu0 %v346
    %v348 = vpop.xlane.xlu0 %347
    %v349 = vsel %vm298, %v345, 0.0
    %350 = vadd.xlane.f32.xlu0 %v349
    %v351 = vpop.xlane.xlu0 %350
    %v352 = vrcp.pop %v348
    %v353 = vrcp.pop %v351
    %v354 = vmul.f32 %v343, %v352
    %v355 = vmul.f32 %v345, %v353
    %356 = vrot.lane.b32.xlu0 %v287, 64
    %v357 = vpop.permute.xlu0 %356
    %358 = vrot.lane.b32.xlu0 %v290, 64
    %v359 = vpop.permute.xlu0 %358
    %v363 = vsel %vm298, %v354, 0
    %v366 = vsel %vm298, %v355, 0
    %368 = vmatpush.msra.mxu0 0.0
    %369 = vmatpush.msra.mxu0 0.0
    %370 = vmatpush.msra.mxu0 0.0
    %371 = vmatpush.msra.mxu0 0.0
    %372 = vmatpush.msra.mxu0 0.0
    %373 = vmatpush.msra.mxu0 0.0
    %374 = vmatpush.msra.mxu0 0.0
    %375 = vmatpush.msra.mxu0 0.0
    %376 = vmatpush.msra.mxu0 0.0
    %377 = vmatpush.msra.mxu0 0.0
    %378 = vmatpush.msra.mxu0 0.0
    %379 = vmatpush.msra.mxu0 0.0
    %380 = vmatpush.msra.mxu0 0.0
    %381 = vmatpush.msra.mxu0 0.0
    %382 = vmatpush.msra.mxu0 %v359
    %383 = vmatpush.msra.mxu0 %v357
    %384 = vmatmul.f32.gmra.mxu0 %v363
    %v385 = vpop.f32.mrf.mxu0
    %v386 = vadd.f32 0.0, %v385
    %387 = vmatmul.f32.gmra.mxu0 %v366
    %v388 = vpop.f32.mrf.mxu0
    %v389 = vadd.f32 0.0, %v388
    %390 = vdwg.mxu0
    %391 = vrot.lane.b32.xlu0 %v287, 112
    %v392 = vpop.permute.xlu0 %391
    %393 = vrot.lane.b32.xlu0 %v290, 112
    %v394 = vpop.permute.xlu0 %393
    %395 = vrot.lane.b32.xlu0 %v287, 80
    %v396 = vpop.permute.xlu0 %395
    %397 = vrot.lane.b32.xlu0 %v290, 80
    %v398 = vpop.permute.xlu0 %397
    %v399 = vsel %vm298, %v392, 0
    %v401 = vsel %vm298, %v394, 0
    %v403 = vsel %vm298, %v396, 0
    %v405 = vsel %vm298, %v398, 0
    %407 = vmatpush.xpose.msra.mxu0 0.0
    %408 = vmatpush.xpose.msra.mxu0 0.0
    %409 = vmatpush.xpose.msra.mxu0 0.0
    %410 = vmatpush.xpose.msra.mxu0 0.0
    %411 = vmatpush.xpose.msra.mxu0 0.0
    %412 = vmatpush.xpose.msra.mxu0 0.0
    %413 = vmatpush.xpose.msra.mxu0 0.0
    %414 = vmatpush.xpose.msra.mxu0 0.0
    %415 = vmatpush.xpose.msra.mxu0 0.0
    %416 = vmatpush.xpose.msra.mxu0 0.0
    %417 = vmatpush.xpose.msra.mxu0 0.0
    %418 = vmatpush.xpose.msra.mxu0 0.0
    %419 = vmatpush.xpose.msra.mxu0 0.0
    %420 = vmatpush.xpose.msra.mxu0 0.0
    %421 = vmatpush.xpose.msra.mxu0 %v405
    %422 = vmatpush.xpose.msra.mxu0 %v403
    %423 = vmatmul.f32.gmra.mxu0 %v399
    %v424 = vpop.f32.mrf.mxu0
    %v425 = vadd.f32 0.0, %v424
    %426 = vmatmul.f32.gmra.mxu0 %v401
    %v427 = vpop.f32.mrf.mxu0
    %v428 = vadd.f32 0.0, %v427
    %429 = vdwg.mxu0
    %v430 = vmul.f32 %v425, 0.25
    %v431 = vmul.f32 %v428, 0.25
    %v432 = vadd.f32 %v430, %v253
    %v433 = vadd.f32 %v431, %v254
    %v434 = vsel %vm298, %v432, -inf
    %435 = vmax.xlane.f32.xlu0 %v434
    %v436 = vpop.xlane.xlu0 %435
    %v437 = vsel %vm298, %v433, -inf
    %438 = vmax.xlane.f32.xlu0 %v437
    %v439 = vpop.xlane.xlu0 %438
    %v440 = vsub.f32 %v432, %v436
    %v441 = vsub.f32 %v433, %v439
    %v442 = vmul.f32 %v440, 1.442695
    %v443 = vpow.pop %v442
    %v444 = vmul.f32 %v441, 1.442695
    %v445 = vpow.pop %v444
    %v446 = vsel %vm298, %v443, 0.0
    %447 = vadd.xlane.f32.xlu0 %v446
    %v448 = vpop.xlane.xlu0 %447
    %v449 = vsel %vm298, %v445, 0.0
    %450 = vadd.xlane.f32.xlu0 %v449
    %v451 = vpop.xlane.xlu0 %450
    %v452 = vrcp.pop %v448
    %v453 = vrcp.pop %v451
    %v454 = vmul.f32 %v443, %v452
    %v455 = vmul.f32 %v445, %v453
    %456 = vrot.lane.b32.xlu0 %v287, 48
    %v457 = vpop.permute.xlu0 %456
    %458 = vrot.lane.b32.xlu0 %v290, 48
    %v459 = vpop.permute.xlu0 %458
    %v463 = vsel %vm298, %v454, 0
    %v466 = vsel %vm298, %v455, 0
    %468 = vmatpush.msra.mxu0 0.0
    %469 = vmatpush.msra.mxu0 0.0
    %470 = vmatpush.msra.mxu0 0.0
    %471 = vmatpush.msra.mxu0 0.0
    %472 = vmatpush.msra.mxu0 0.0
    %473 = vmatpush.msra.mxu0 0.0
    %474 = vmatpush.msra.mxu0 0.0
    %475 = vmatpush.msra.mxu0 0.0
    %476 = vmatpush.msra.mxu0 0.0
    %477 = vmatpush.msra.mxu0 0.0
    %478 = vmatpush.msra.mxu0 0.0
    %479 = vmatpush.msra.mxu0 0.0
    %480 = vmatpush.msra.mxu0 0.0
    %481 = vmatpush.msra.mxu0 0.0
    %482 = vmatpush.msra.mxu0 %v459
    %483 = vmatpush.msra.mxu0 %v457
    %484 = vmatmul.f32.gmra.mxu0 %v463
    %v485 = vpop.f32.mrf.mxu0
    %v486 = vadd.f32 0.0, %v485
    %487 = vmatmul.f32.gmra.mxu0 %v466
    %v488 = vpop.f32.mrf.mxu0
    %v489 = vadd.f32 0.0, %v488
    %490 = vdwg.mxu0
    %493 = vrot.lane.b32.xlu0 %v486, 16
    %v494 = vpop.permute.xlu0 %493
    %495 = vrot.lane.b32.xlu0 %v489, 16
    %v496 = vpop.permute.xlu0 %495
    %v499 = vsel %vm298, %v386, %v494
    %v500 = vsel %vm298, %v389, %v496
    %v501 = vld [vmem:[%s6] sm:$0xff]
    %v502 = vld [vmem:[%s6 + $0x8] sm:$0xff]
    %v503 = vld [vmem:[%s6 + $0x10] sm:$0xff]
    %v504 = vld [vmem:[%s6 + $0x18] sm:$0xff]
    %v505 = vld [vmem:[%s7] sm:$0x1]
    %v507 = vperm.slane %v505, 0
    %v510 = vsel %vm191, %v499, 0
    %v513 = vsel %vm191, %v500, 0
    %515 = vmatpush.msra.mxu0 0.0
    %516 = vmatpush.msra.mxu0 0.0
    %517 = vmatpush.msra.mxu0 0.0
    %518 = vmatpush.msra.mxu0 0.0
    %519 = vmatpush.msra.mxu0 0.0
    %520 = vmatpush.msra.mxu0 0.0
    %521 = vmatpush.msra.mxu0 0.0
    %522 = vmatpush.msra.mxu0 0.0
    %523 = vmatpush.msra.mxu0 0.0
    %524 = vmatpush.msra.mxu0 0.0
    %525 = vmatpush.msra.mxu0 0.0
    %526 = vmatpush.msra.mxu0 0.0
    %527 = vmatpush.msra.mxu0 %v504
    %528 = vmatpush.msra.mxu0 %v503
    %529 = vmatpush.msra.mxu0 %v502
    %530 = vmatpush.msra.mxu0 %v501
    %531 = vmatmul.f32.gmra.mxu0 %v510
    %v532 = vpop.f32.mrf.mxu0
    %v533 = vadd.f32 %v507, %v532
    %534 = vmatmul.f32.gmra.mxu0 %v513
    %v535 = vpop.f32.mrf.mxu0
    %v536 = vadd.f32 %v507, %v535
    %537 = vdwg.mxu0
    %v538 = vadd.f32 %v251, %v533
    %v539 = vadd.f32 %v252, %v536
    %v540 = vld [vmem:[#allocation10] sm:$0x1]
    %v541 = vld [vmem:[%s9] sm:$0x1]
    %v542 = vsel %vm191, %v538, 0.0
    %543 = vadd.xlane.f32.xlu0 %v542
    %v544 = vpop.xlane.xlu0 %543
    %v545 = vsel %vm191, %v539, 0.0
    %546 = vadd.xlane.f32.xlu0 %v545
    %v547 = vpop.xlane.xlu0 %546
    %v548 = vmul.f32 %v544, %v204
    %v549 = vmul.f32 %v547, %v204
    %v550 = vsub.f32 %v538, %v548
    %v551 = vsub.f32 %v539, %v549
    %v552 = vmul.f32 %v550, %v550
    %v553 = vmul.f32 %v551, %v551
    %v554 = vsel %vm191, %v552, 0.0
    %555 = vadd.xlane.f32.xlu0 %v554
    %v556 = vpop.xlane.xlu0 %555
    %v557 = vsel %vm191, %v553, 0.0
    %558 = vadd.xlane.f32.xlu0 %v557
    %v559 = vpop.xlane.xlu0 %558
    %v560 = vmul.f32 %v556, %v204
    %v561 = vmul.f32 %v559, %v204
    %v562 = vadd.f32 %v560, 1e-12
    %v563 = vadd.f32 %v561, 1e-12
    %v564 = vrsqrt.pop %v562
    %v565 = vmul.f32 %v564, %v562
    %v566 = vmul.f32 %v565, %v564
    %v567 = vmul.f32 0.5, %v566
    %v568 = vsub.f32 1.5, %v567
    %v569 = vmul.f32 %v564, %v568
    %vm570 = vweird.f32 %v562
    %vm571 = vweird.f32 %v564
    %vm572 = vmor %vm570, %vm571
    %v573 = vsel %vm572, %v564, %v569
    %v574 = vrsqrt.pop %v563
    %v575 = vmul.f32 %v574, %v563
    %v576 = vmul.f32 %v575, %v574
    %v577 = vmul.f32 0.5, %v576
    %v578 = vsub.f32 1.5, %v577
    %v579 = vmul.f32 %v574, %v578
    %vm580 = vweird.f32 %v563
    %vm581 = vweird.f32 %v574
    %vm582 = vmor %vm580, %vm581
    %v583 = vsel %vm582, %v574, %v579
    %v584 = vmul.f32 %v550, %v573
    %v585 = vmul.f32 %v551, %v583
    %v587 = vperm.slane %v540, 0
    %v589 = vmul.f32 %v584, %v587
    %v590 = vmul.f32 %v585, %v587
    %v592 = vperm.slane %v541, 0
    %v594 = vadd.f32 %v589, %v592
    %v595 = vadd.f32 %v590, %v592
    %v596 = vld [vmem:[%s10] sm:$0xff]
    %v597 = vld [vmem:[%s10 + $0x8] sm:$0xff]
    %v598 = vld [vmem:[%s10 + $0x10] sm:$0xff]
    %v599 = vld [vmem:[%s10 + $0x18] sm:$0xff]
    %v600 = vld [vmem:[%s11] sm:$0x1]
    %v602 = vperm.slane %v600, 0
    %v605 = vsel %vm191, %v594, 0
    %v608 = vsel %vm191, %v595, 0
    %610 = vmatpush.msra.mxu0 0.0
    %611 = vmatpush.msra.mxu0 0.0
    %612 = vmatpush.msra.mxu0 0.0
    %613 = vmatpush.msra.mxu0 0.0
    %614 = vmatpush.msra.mxu0 0.0
    %615 = vmatpush.msra.mxu0 0.0
    %616 = vmatpush.msra.mxu0 0.0
    %617 = vmatpush.msra.mxu0 0.0
    %618 = vmatpush.msra.mxu0 0.0
    %619 = vmatpush.msra.mxu0 0.0
    %620 = vmatpush.msra.mxu0 0.0
    %621 = vmatpush.msra.mxu0 0.0
    %622 = vmatpush.msra.mxu0 %v599
    %623 = vmatpush.msra.mxu0 %v598
    %624 = vmatpush.msra.mxu0 %v597
    %625 = vmatpush.msra.mxu0 %v596
    %626 = vmatmul.f32.gmra.mxu0 %v605
    %v627 = vpop.f32.mrf.mxu0
    %v628 = vadd.f32 %v602, %v627
    %629 = vmatmul.f32.gmra.mxu0 %v608
    %v630 = vpop.f32.mrf.mxu0
    %v631 = vadd.f32 %v602, %v630
    %632 = vdwg.mxu0
    %v633 = vmul.f32 %v628, 0.5
    %v634 = vmul.f32 %v631, 0.5
    %v635 = vmul.f32 %v628, 0.044715
    %v636 = vmul.f32 %v631, 0.044715
    %v637 = vmul.f32 %v635, %v628
    %v638 = vmul.f32 %v636, %v631
    %v639 = vmul.f32 %v637, %v628
    %v640 = vmul.f32 %v638, %v631
    %v641 = vadd.f32 %v628, %v639
    %v642 = vadd.f32 %v631, %v640
    %v643 = vmul.f32 %v641, 0.7978846
    %v644 = vmul.f32 %v642, 0.7978846
    %v645 = vtanh.pop %v643
    %v646 = vtanh.pop %v644
    %v647 = vadd.f32 %v645, 1.0
    %v648 = vadd.f32 %v646, 1.0
    %v649 = vmul.f32 %v633, %v647
    %v650 = vmul.f32 %v634, %v648
    %v651 = vld [vmem:[%s12] sm:$0xff]
    %v652 = vld [vmem:[%s12 + $0x8] sm:$0xff]
    %v653 = vld [vmem:[%s12 + $0x10] sm:$0xff]
    %v654 = vld [vmem:[%s12 + $0x18] sm:$0xff]
    %v655 = vld [vmem:[%s12 + $0x20] sm:$0xff]
    %v656 = vld [vmem:[%s12 + $0x28] sm:$0xff]
    %v657 = vld [vmem:[%s12 + $0x30] sm:$0xff]
    %v658 = vld [vmem:[%s12 + $0x38] sm:$0xff]
    %v659 = vld [vmem:[%s13] sm:$0x1]
    %v661 = vperm.slane %v659, 0
    %vm663 = vcmask 523264
    %v665 = vsel %vm663, %v649, 0
    %v668 = vsel %vm663, %v650, 0
    %670 = vmatpush.msra.mxu0 0.0
    %671 = vmatpush.msra.mxu0 0.0
    %672 = vmatpush.msra.mxu0 0.0
    %673 = vmatpush.msra.mxu0 0.0
    %674 = vmatpush.msra.mxu0 0.0
    %675 = vmatpush.msra.mxu0 0.0
    %676 = vmatpush.msra.mxu0 0.0
    %677 = vmatpush.msra.mxu0 0.0
    %678 = vmatpush.msra.mxu0 %v658
    %679 = vmatpush.msra.mxu0 %v657
    %680 = vmatpush.msra.mxu0 %v656
    %681 = vmatpush.msra.mxu0 %v655
    %682 = vmatpush.msra.mxu0 %v654
    %683 = vmatpush.msra.mxu0 %v653
    %684 = vmatpush.msra.mxu0 %v652
    %685 = vmatpush.msra.mxu0 %v651
    %686 = vmatmul.f32.gmra.mxu0 %v665
    %v687 = vpop.f32.mrf.mxu0
    %v688 = vadd.f32 %v661, %v687
    %689 = vmatmul.f32.gmra.mxu0 %v668
    %v690 = vpop.f32.mrf.mxu0
    %v691 = vadd.f32 %v661, %v690
    %692 = vdwg.mxu0
    %v693 = vadd.f32 %v594, %v688
    %v694 = vadd.f32 %v595, %v691
    %v695 = vld [vmem:[#allocation11] sm:$0x1]
    %v696 = vld [vmem:[%s15] sm:$0x1]
    %v697 = vsel %vm191, %v693, 0.0
    %698 = vadd.xlane.f32.xlu0 %v697
    %v699 = vpop.xlane.xlu0 %698
    %v700 = vsel %vm191, %v694, 0.0
    %701 = vadd.xlane.f32.xlu0 %v700
    %v702 = vpop.xlane.xlu0 %701
    %v703 = vmul.f32 %v699, %v204
    %v704 = vmul.f32 %v702, %v204
    %v705 = vsub.f32 %v693, %v703
    %v706 = vsub.f32 %v694, %v704
    %v707 = vmul.f32 %v705, %v705
    %v708 = vmul.f32 %v706, %v706
    %v709 = vsel %vm191, %v707, 0.0
    %710 = vadd.xlane.f32.xlu0 %v709
    %v711 = vpop.xlane.xlu0 %710
    %v712 = vsel %vm191, %v708, 0.0
    %713 = vadd.xlane.f32.xlu0 %v712
    %v714 = vpop.xlane.xlu0 %713
    %v715 = vmul.f32 %v711, %v204
    %v716 = vmul.f32 %v714, %v204
    %v717 = vadd.f32 %v715, 1e-12
    %v718 = vadd.f32 %v716, 1e-12
    %v719 = vrsqrt.pop %v717
    %v720 = vmul.f32 %v719, %v717
    %v721 = vmul.f32 %v720, %v719
    %v722 = vmul.f32 0.5, %v721
    %v723 = vsub.f32 1.5, %v722
    %v724 = vmul.f32 %v719, %v723
    %vm725 = vweird.f32 %v717
    %vm726 = vweird.f32 %v719
    %vm727 = vmor %vm725, %vm726
    %v728 = vsel %vm727, %v719, %v724
    %v729 = vrsqrt.pop %v718
    %v730 = vmul.f32 %v729, %v718
    %v731 = vmul.f32 %v730, %v729
    %v732 = vmul.f32 0.5, %v731
    %v733 = vsub.f32 1.5, %v732
    %v734 = vmul.f32 %v729, %v733
    %vm735 = vweird.f32 %v718
    %vm736 = vweird.f32 %v729
    %vm737 = vmor %vm735, %vm736
    %v738 = vsel %vm737, %v729, %v734
    %v739 = vmul.f32 %v705, %v728
    %v740 = vmul.f32 %v706, %v738
    %v742 = vperm.slane %v695, 0
    %v744 = vmul.f32 %v739, %v742
    %v745 = vmul.f32 %v740, %v742
    %v747 = vperm.slane %v696, 0
    %v749 = vadd.f32 %v744, %v747
    %v750 = vadd.f32 %v745, %v747
    %s751 = scalar_lea.vmem %s4, 32
    %v752 = vld [vmem:[%s751] sm:$0xff]
    %v753 = vld [vmem:[%s751 + $0x8] sm:$0xff]
    %v754 = vld [vmem:[%s751 + $0x10] sm:$0xff]
    %v755 = vld [vmem:[%s751 + $0x18] sm:$0xff]
    %s756 = scalar_lea.vmem %s5, 1
    %v757 = vld [vmem:[%s756] sm:$0x1]
    %v759 = vperm.slane %v757, 0
    %v762 = vsel %vm191, %v749, 0
    %v765 = vsel %vm191, %v750, 0
    %767 = vmatpush.msra.mxu0 0.0
    %768 = vmatpush.msra.mxu0 0.0
    %769 = vmatpush.msra.mxu0 0.0
    %770 = vmatpush.msra.mxu0 0.0
    %771 = vmatpush.msra.mxu0 0.0
    %772 = vmatpush.msra.mxu0 0.0
    %773 = vmatpush.msra.mxu0 0.0
    %774 = vmatpush.msra.mxu0 0.0
    %775 = vmatpush.msra.mxu0 0.0
    %776 = vmatpush.msra.mxu0 0.0
    %777 = vmatpush.msra.mxu0 0.0
    %778 = vmatpush.msra.mxu0 0.0
    %779 = vmatpush.msra.mxu0 %v755
    %780 = vmatpush.msra.mxu0 %v754
    %781 = vmatpush.msra.mxu0 %v753
    %782 = vmatpush.msra.mxu0 %v752
    %783 = vmatmul.f32.gmra.mxu0 %v762
    %v784 = vpop.f32.mrf.mxu0
    %v785 = vadd.f32 %v759, %v784
    %786 = vmatmul.f32.gmra.mxu0 %v765
    %v787 = vpop.f32.mrf.mxu0
    %v788 = vadd.f32 %v759, %v787
    %789 = vdwg.mxu0
    %792 = vrot.lane.b32.xlu0 %v785, 96
    %v793 = vpop.permute.xlu0 %792
    %794 = vrot.lane.b32.xlu0 %v788, 96
    %v795 = vpop.permute.xlu0 %794
    %v796 = vsel %vm298, %v785, 0
    %v798 = vsel %vm298, %v788, 0
    %v800 = vsel %vm298, %v793, 0
    %v802 = vsel %vm298, %v795, 0
    %804 = vmatpush.xpose.msra.mxu0 0.0
    %805 = vmatpush.xpose.msra.mxu0 0.0
    %806 = vmatpush.xpose.msra.mxu0 0.0
    %807 = vmatpush.xpose.msra.mxu0 0.0
    %808 = vmatpush.xpose.msra.mxu0 0.0
    %809 = vmatpush.xpose.msra.mxu0 0.0
    %810 = vmatpush.xpose.msra.mxu0 0.0
    %811 = vmatpush.xpose.msra.mxu0 0.0
    %812 = vmatpush.xpose.msra.mxu0 0.0
    %813 = vmatpush.xpose.msra.mxu0 0.0
    %814 = vmatpush.xpose.msra.mxu0 0.0
    %815 = vmatpush.xpose.msra.mxu0 0.0
    %816 = vmatpush.xpose.msra.mxu0 0.0
    %817 = vmatpush.xpose.msra.mxu0 0.0
    %818 = vmatpush.xpose.msra.mxu0 %v802
    %819 = vmatpush.xpose.msra.mxu0 %v800
    %820 = vmatmul.f32.gmra.mxu0 %v796
    %v821 = vpop.f32.mrf.mxu0
    %v822 = vadd.f32 0.0, %v821
    %823 = vmatmul.f32.gmra.mxu0 %v798
    %v824 = vpop.f32.mrf.mxu0
    %v825 = vadd.f32 0.0, %v824
    %826 = vdwg.mxu0
    %v827 = vmul.f32 %v822, 0.25
    %v828 = vmul.f32 %v825, 0.25
    %v829 = vadd.f32 %v827, %v253
    %v830 = vadd.f32 %v828, %v254
    %v831 = vsel %vm298, %v829, -inf
    %832 = vmax.xlane.f32.xlu0 %v831
    %v833 = vpop.xlane.xlu0 %832
    %v834 = vsel %vm298, %v830, -inf
    %835 = vmax.xlane.f32.xlu0 %v834
    %v836 = vpop.xlane.xlu0 %835
    %v837 = vsub.f32 %v829, %v833
    %v838 = vsub.f32 %v830, %v836
    %v839 = vmul.f32 %v837, 1.442695
    %v840 = vpow.pop %v839
    %v841 = vmul.f32 %v838, 1.442695
    %v842 = vpow.pop %v841
    %v843 = vsel %vm298, %v840, 0.0
    %844 = vadd.xlane.f32.xlu0 %v843
    %v845 = vpop.xlane.xlu0 %844
    %v846 = vsel %vm298, %v842, 0.0
    %847 = vadd.xlane.f32.xlu0 %v846
    %v848 = vpop.xlane.xlu0 %847
    %v849 = vrcp.pop %v845
    %v850 = vrcp.pop %v848
    %v851 = vmul.f32 %v840, %v849
    %v852 = vmul.f32 %v842, %v850
    %853 = vrot.lane.b32.xlu0 %v785, 64
    %v854 = vpop.permute.xlu0 %853
    %855 = vrot.lane.b32.xlu0 %v788, 64
    %v856 = vpop.permute.xlu0 %855
    %v860 = vsel %vm298, %v851, 0
    %v863 = vsel %vm298, %v852, 0
    %865 = vmatpush.msra.mxu0 0.0
    %866 = vmatpush.msra.mxu0 0.0
    %867 = vmatpush.msra.mxu0 0.0
    %868 = vmatpush.msra.mxu0 0.0
    %869 = vmatpush.msra.mxu0 0.0
    %870 = vmatpush.msra.mxu0 0.0
    %871 = vmatpush.msra.mxu0 0.0
    %872 = vmatpush.msra.mxu0 0.0
    %873 = vmatpush.msra.mxu0 0.0
    %874 = vmatpush.msra.mxu0 0.0
    %875 = vmatpush.msra.mxu0 0.0
    %876 = vmatpush.msra.mxu0 0.0
    %877 = vmatpush.msra.mxu0 0.0
    %878 = vmatpush.msra.mxu0 0.0
    %879 = vmatpush.msra.mxu0 %v856
    %880 = vmatpush.msra.mxu0 %v854
    %881 = vmatmul.f32.gmra.mxu0 %v860
    %v882 = vpop.f32.mrf.mxu0
    %v883 = vadd.f32 0.0, %v882
    %884 = vmatmul.f32.gmra.mxu0 %v863
    %v885 = vpop.f32.mrf.mxu0
    %v886 = vadd.f32 0.0, %v885
    %887 = vdwg.mxu0
    %888 = vrot.lane.b32.xlu0 %v785, 112
    %v889 = vpop.permute.xlu0 %888
    %890 = vrot.lane.b32.xlu0 %v788, 112
    %v891 = vpop.permute.xlu0 %890
    %892 = vrot.lane.b32.xlu0 %v785, 80
    %v893 = vpop.permute.xlu0 %892
    %894 = vrot.lane.b32.xlu0 %v788, 80
    %v895 = vpop.permute.xlu0 %894
    %v896 = vsel %vm298, %v889, 0
    %v898 = vsel %vm298, %v891, 0
    %v900 = vsel %vm298, %v893, 0
    %v902 = vsel %vm298, %v895, 0
    %904 = vmatpush.xpose.msra.mxu0 0.0
    %905 = vmatpush.xpose.msra.mxu0 0.0
    %906 = vmatpush.xpose.msra.mxu0 0.0
    %907 = vmatpush.xpose.msra.mxu0 0.0
    %908 = vmatpush.xpose.msra.mxu0 0.0
    %909 = vmatpush.xpose.msra.mxu0 0.0
    %910 = vmatpush.xpose.msra.mxu0 0.0
    %911 = vmatpush.xpose.msra.mxu0 0.0
    %912 = vmatpush.xpose.msra.mxu0 0.0
    %913 = vmatpush.xpose.msra.mxu0 0.0
    %914 = vmatpush.xpose.msra.mxu0 0.0
    %915 = vmatpush.xpose.msra.mxu0 0.0
    %916 = vmatpush.xpose.msra.mxu0 0.0
    %917 = vmatpush.xpose.msra.mxu0 0.0
    %918 = vmatpush.xpose.msra.mxu0 %v902
    %919 = vmatpush.xpose.msra.mxu0 %v900
    %920 = vmatmul.f32.gmra.mxu0 %v896
    %v921 = vpop.f32.mrf.mxu0
    %v922 = vadd.f32 0.0, %v921
    %923 = vmatmul.f32.gmra.mxu0 %v898
    %v924 = vpop.f32.mrf.mxu0
    %v925 = vadd.f32 0.0, %v924
    %926 = vdwg.mxu0
    %v927 = vmul.f32 %v922, 0.25
    %v928 = vmul.f32 %v925, 0.25
    %v929 = vadd.f32 %v927, %v253
    %v930 = vadd.f32 %v928, %v254
    %v931 = vsel %vm298, %v929, -inf
    %932 = vmax.xlane.f32.xlu0 %v931
    %v933 = vpop.xlane.xlu0 %932
    %v934 = vsel %vm298, %v930, -inf
    %935 = vmax.xlane.f32.xlu0 %v934
    %v936 = vpop.xlane.xlu0 %935
    %v937 = vsub.f32 %v929, %v933
    %v938 = vsub.f32 %v930, %v936
    %v939 = vmul.f32 %v937, 1.442695
    %v940 = vpow.pop %v939
    %v941 = vmul.f32 %v938, 1.442695
    %v942 = vpow.pop %v941
    %v943 = vsel %vm298, %v940, 0.0
    %944 = vadd.xlane.f32.xlu0 %v943
    %v945 = vpop.xlane.xlu0 %944
    %v946 = vsel %vm298, %v942, 0.0
    %947 = vadd.xlane.f32.xlu0 %v946
    %v948 = vpop.xlane.xlu0 %947
    %v949 = vrcp.pop %v945
    %v950 = vrcp.pop %v948
    %v951 = vmul.f32 %v940, %v949
    %v952 = vmul.f32 %v942, %v950
    %953 = vrot.lane.b32.xlu0 %v785, 48
    %v954 = vpop.permute.xlu0 %953
    %955 = vrot.lane.b32.xlu0 %v788, 48
    %v956 = vpop.permute.xlu0 %955
    %v960 = vsel %vm298, %v951, 0
    %v963 = vsel %vm298, %v952, 0
    %965 = vmatpush.msra.mxu0 0.0
    %966 = vmatpush.msra.mxu0 0.0
    %967 = vmatpush.msra.mxu0 0.0
    %968 = vmatpush.msra.mxu0 0.0
    %969 = vmatpush.msra.mxu0 0.0
    %970 = vmatpush.msra.mxu0 0.0
    %971 = vmatpush.msra.mxu0 0.0
    %972 = vmatpush.msra.mxu0 0.0
    %973 = vmatpush.msra.mxu0 0.0
    %974 = vmatpush.msra.mxu0 0.0
    %975 = vmatpush.msra.mxu0 0.0
    %976 = vmatpush.msra.mxu0 0.0
    %977 = vmatpush.msra.mxu0 0.0
    %978 = vmatpush.msra.mxu0 0.0
    %979 = vmatpush.msra.mxu0 %v956
    %980 = vmatpush.msra.mxu0 %v954
    %981 = vmatmul.f32.gmra.mxu0 %v960
    %v982 = vpop.f32.mrf.mxu0
    %v983 = vadd.f32 0.0, %v982
    %984 = vmatmul.f32.gmra.mxu0 %v963
    %v985 = vpop.f32.mrf.mxu0
    %v986 = vadd.f32 0.0, %v985
    %987 = vdwg.mxu0
    %990 = vrot.lane.b32.xlu0 %v983, 16
    %v991 = vpop.permute.xlu0 %990
    %992 = vrot.lane.b32.xlu0 %v986, 16
    %v993 = vpop.permute.xlu0 %992
    %v996 = vsel %vm298, %v883, %v991
    %v997 = vsel %vm298, %v886, %v993
    %s998 = scalar_lea.vmem %s6, 32
    %v999 = vld [vmem:[%s998] sm:$0xff]
    %v1000 = vld [vmem:[%s998 + $0x8] sm:$0xff]
    %v1001 = vld [vmem:[%s998 + $0x10] sm:$0xff]
    %v1002 = vld [vmem:[%s998 + $0x18] sm:$0xff]
    %s1003 = scalar_lea.vmem %s7, 1
    %v1004 = vld [vmem:[%s1003] sm:$0x1]
    %v1006 = vperm.slane %v1004, 0
    %v1009 = vsel %vm191, %v996, 0
    %v1012 = vsel %vm191, %v997, 0
    %1014 = vmatpush.msra.mxu0 0.0
    %1015 = vmatpush.msra.mxu0 0.0
    %1016 = vmatpush.msra.mxu0 0.0
    %1017 = vmatpush.msra.mxu0 0.0
    %1018 = vmatpush.msra.mxu0 0.0
    %1019 = vmatpush.msra.mxu0 0.0
    %1020 = vmatpush.msra.mxu0 0.0
    %1021 = vmatpush.msra.mxu0 0.0
    %1022 = vmatpush.msra.mxu0 0.0
    %1023 = vmatpush.msra.mxu0 0.0
    %1024 = vmatpush.msra.mxu0 0.0
    %1025 = vmatpush.msra.mxu0 0.0
    %1026 = vmatpush.msra.mxu0 %v1002
    %1027 = vmatpush.msra.mxu0 %v1001
    %1028 = vmatpush.msra.mxu0 %v1000
    %1029 = vmatpush.msra.mxu0 %v999
    %1030 = vmatmul.f32.gmra.mxu0 %v1009
    %v1031 = vpop.f32.mrf.mxu0
    %v1032 = vadd.f32 %v1006, %v1031
    %1033 = vmatmul.f32.gmra.mxu0 %v1012
    %v1034 = vpop.f32.mrf.mxu0
    %v1035 = vadd.f32 %v1006, %v1034
    %1036 = vdwg.mxu0
    %v1037 = vadd.f32 %v749, %v1032
    %v1038 = vadd.f32 %v750, %v1035
    %s1039 = scalar_lea.vmem [#allocation10], 1
    %v1040 = vld [vmem:[%s1039] sm:$0x1]
    %s1041 = scalar_lea.vmem %s9, 1
    %v1042 = vld [vmem:[%s1041] sm:$0x1]
    %v1043 = vsel %vm191, %v1037, 0.0
    %1044 = vadd.xlane.f32.xlu0 %v1043
    %v1045 = vpop.xlane.xlu0 %1044
    %v1046 = vsel %vm191, %v1038, 0.0
    %1047 = vadd.xlane.f32.xlu0 %v1046
    %v1048 = vpop.xlane.xlu0 %1047
    %v1049 = vmul.f32 %v1045, %v204
    %v1050 = vmul.f32 %v1048, %v204
    %v1051 = vsub.f32 %v1037, %v1049
    %v1052 = vsub.f32 %v1038, %v1050
    %v1053 = vmul.f32 %v1051, %v1051
    %v1054 = vmul.f32 %v1052, %v1052
    %v1055 = vsel %vm191, %v1053, 0.0
    %1056 = vadd.xlane.f32.xlu0 %v1055
    %v1057 = vpop.xlane.xlu0 %1056
    %v1058 = vsel %vm191, %v1054, 0.0
    %1059 = vadd.xlane.f32.xlu0 %v1058
    %v1060 = vpop.xlane.xlu0 %1059
    %v1061 = vmul.f32 %v1057, %v204
    %v1062 = vmul.f32 %v1060, %v204
    %v1063 = vadd.f32 %v1061, 1e-12
    %v1064 = vadd.f32 %v1062, 1e-12
    %v1065 = vrsqrt.pop %v1063
    %v1066 = vmul.f32 %v1065, %v1063
    %v1067 = vmul.f32 %v1066, %v1065
    %v1068 = vmul.f32 0.5, %v1067
    %v1069 = vsub.f32 1.5, %v1068
    %v1070 = vmul.f32 %v1065, %v1069
    %vm1071 = vweird.f32 %v1063
    %vm1072 = vweird.f32 %v1065
    %vm1073 = vmor %vm1071, %vm1072
    %v1074 = vsel %vm1073, %v1065, %v1070
    %v1075 = vrsqrt.pop %v1064
    %v1076 = vmul.f32 %v1075, %v1064
    %v1077 = vmul.f32 %v1076, %v1075
    %v1078 = vmul.f32 0.5, %v1077
    %v1079 = vsub.f32 1.5, %v1078
    %v1080 = vmul.f32 %v1075, %v1079
    %vm1081 = vweird.f32 %v1064
    %vm1082 = vweird.f32 %v1075
    %vm1083 = vmor %vm1081, %vm1082
    %v1084 = vsel %vm1083, %v1075, %v1080
    %v1085 = vmul.f32 %v1051, %v1074
    %v1086 = vmul.f32 %v1052, %v1084
    %v1088 = vperm.slane %v1040, 0
    %v1090 = vmul.f32 %v1085, %v1088
    %v1091 = vmul.f32 %v1086, %v1088
    %v1093 = vperm.slane %v1042, 0
    %v1095 = vadd.f32 %v1090, %v1093
    %v1096 = vadd.f32 %v1091, %v1093
    %s1097 = scalar_lea.vmem %s10, 32
    %v1098 = vld [vmem:[%s1097] sm:$0xff]
    %v1099 = vld [vmem:[%s1097 + $0x8] sm:$0xff]
    %v1100 = vld [vmem:[%s1097 + $0x10] sm:$0xff]
    %v1101 = vld [vmem:[%s1097 + $0x18] sm:$0xff]
    %s1102 = scalar_lea.vmem %s11, 1
    %v1103 = vld [vmem:[%s1102] sm:$0x1]
    %v1105 = vperm.slane %v1103, 0
    %v1108 = vsel %vm191, %v1095, 0
    %v1111 = vsel %vm191, %v1096, 0
    %1113 = vmatpush.msra.mxu0 0.0
    %1114 = vmatpush.msra.mxu0 0.0
    %1115 = vmatpush.msra.mxu0 0.0
    %1116 = vmatpush.msra.mxu0 0.0
    %1117 = vmatpush.msra.mxu0 0.0
    %1118 = vmatpush.msra.mxu0 0.0
    %1119 = vmatpush.msra.mxu0 0.0
    %1120 = vmatpush.msra.mxu0 0.0
    %1121 = vmatpush.msra.mxu0 0.0
    %1122 = vmatpush.msra.mxu0 0.0
    %1123 = vmatpush.msra.mxu0 0.0
    %1124 = vmatpush.msra.mxu0 0.0
    %1125 = vmatpush.msra.mxu0 %v1101
    %1126 = vmatpush.msra.mxu0 %v1100
    %1127 = vmatpush.msra.mxu0 %v1099
    %1128 = vmatpush.msra.mxu0 %v1098
    %1129 = vmatmul.f32.gmra.mxu0 %v1108
    %v1130 = vpop.f32.mrf.mxu0
    %v1131 = vadd.f32 %v1105, %v1130
    %1132 = vmatmul.f32.gmra.mxu0 %v1111
    %v1133 = vpop.f32.mrf.mxu0
    %v1134 = vadd.f32 %v1105, %v1133
    %1135 = vdwg.mxu0
    %v1136 = vmul.f32 %v1131, 0.5
    %v1137 = vmul.f32 %v1134, 0.5
    %v1138 = vmul.f32 %v1131, 0.044715
    %v1139 = vmul.f32 %v1134, 0.044715
    %v1140 = vmul.f32 %v1138, %v1131
    %v1141 = vmul.f32 %v1139, %v1134
    %v1142 = vmul.f32 %v1140, %v1131
    %v1143 = vmul.f32 %v1141, %v1134
    %v1144 = vadd.f32 %v1131, %v1142
    %v1145 = vadd.f32 %v1134, %v1143
    %v1146 = vmul.f32 %v1144, 0.7978846
    %v1147 = vmul.f32 %v1145, 0.7978846
    %v1148 = vtanh.pop %v1146
    %v1149 = vtanh.pop %v1147
    %v1150 = vadd.f32 %v1148, 1.0
    %v1151 = vadd.f32 %v1149, 1.0
    %v1152 = vmul.f32 %v1136, %v1150
    %v1153 = vmul.f32 %v1137, %v1151
    %s1154 = scalar_lea.vmem %s12, 64
    %v1155 = vld [vmem:[%s1154] sm:$0xff]
    %v1156 = vld [vmem:[%s1154 + $0x8] sm:$0xff]
    %v1157 = vld [vmem:[%s1154 + $0x10] sm:$0xff]
    %v1158 = vld [vmem:[%s1154 + $0x18] sm:$0xff]
    %v1159 = vld [vmem:[%s1154 + $0x20] sm:$0xff]
    %v1160 = vld [vmem:[%s1154 + $0x28] sm:$0xff]
    %v1161 = vld [vmem:[%s1154 + $0x30] sm:$0xff]
    %v1162 = vld [vmem:[%s1154 + $0x38] sm:$0xff]
    %s1163 = scalar_lea.vmem %s13, 1
    %v1164 = vld [vmem:[%s1163] sm:$0x1]
    %v1166 = vperm.slane %v1164, 0
    %v1169 = vsel %vm663, %v1152, 0
    %v1172 = vsel %vm663, %v1153, 0
    %1174 = vmatpush.msra.mxu0 0.0
    %1175 = vmatpush.msra.mxu0 0.0
    %1176 = vmatpush.msra.mxu0 0.0
    %1177 = vmatpush.msra.mxu0 0.0
    %1178 = vmatpush.msra.mxu0 0.0
    %1179 = vmatpush.msra.mxu0 0.0
    %1180 = vmatpush.msra.mxu0 0.0
    %1181 = vmatpush.msra.mxu0 0.0
    %1182 = vmatpush.msra.mxu0 %v1162
    %1183 = vmatpush.msra.mxu0 %v1161
    %1184 = vmatpush.msra.mxu0 %v1160
    %1185 = vmatpush.msra.mxu0 %v1159
    %1186 = vmatpush.msra.mxu0 %v1158
    %1187 = vmatpush.msra.mxu0 %v1157
    %1188 = vmatpush.msra.mxu0 %v1156
    %1189 = vmatpush.msra.mxu0 %v1155
    %1190 = vmatmul.f32.gmra.mxu0 %v1169
    %v1191 = vpop.f32.mrf.mxu0
    %v1192 = vadd.f32 %v1166, %v1191
    %1193 = vmatmul.f32.gmra.mxu0 %v1172
    %v1194 = vpop.f32.mrf.mxu0
    %v1195 = vadd.f32 %v1166, %v1194
    %1196 = vdwg.mxu0
    %v1197 = vadd.f32 %v1095, %v1192
    %v1198 = vadd.f32 %v1096, %v1195
    %s1199 = scalar_lea.vmem [#allocation11], 1
    %v1200 = vld [vmem:[%s1199] sm:$0x1]
    %s1201 = scalar_lea.vmem %s15, 1
    %v1202 = vld [vmem:[%s1201] sm:$0x1]
    %v1203 = vsel %vm191, %v1197, 0.0
    %1204 = vadd.xlane.f32.xlu0 %v1203
    %v1205 = vpop.xlane.xlu0 %1204
    %v1206 = vsel %vm191, %v1198, 0.0
    %1207 = vadd.xlane.f32.xlu0 %v1206
    %v1208 = vpop.xlane.xlu0 %1207
    %v1209 = vmul.f32 %v1205, %v204
    %v1210 = vmul.f32 %v1208, %v204
    %v1211 = vsub.f32 %v1197, %v1209
    %v1212 = vsub.f32 %v1198, %v1210
    %v1213 = vmul.f32 %v1211, %v1211
    %v1214 = vmul.f32 %v1212, %v1212
    %v1215 = vsel %vm191, %v1213, 0.0
    %1216 = vadd.xlane.f32.xlu0 %v1215
    %v1217 = vpop.xlane.xlu0 %1216
    %v1218 = vsel %vm191, %v1214, 0.0
    %1219 = vadd.xlane.f32.xlu0 %v1218
    %v1220 = vpop.xlane.xlu0 %1219
    %v1221 = vmul.f32 %v1217, %v204
    %v1222 = vmul.f32 %v1220, %v204
    %v1223 = vadd.f32 %v1221, 1e-12
    %v1224 = vadd.f32 %v1222, 1e-12
    %v1225 = vrsqrt.pop %v1223
    %v1226 = vmul.f32 %v1225, %v1223
    %v1227 = vmul.f32 %v1226, %v1225
    %v1228 = vmul.f32 0.5, %v1227
    %v1229 = vsub.f32 1.5, %v1228
    %v1230 = vmul.f32 %v1225, %v1229
    %vm1231 = vweird.f32 %v1223
    %vm1232 = vweird.f32 %v1225
    %vm1233 = vmor %vm1231, %vm1232
    %v1234 = vsel %vm1233, %v1225, %v1230
    %v1235 = vrsqrt.pop %v1224
    %v1236 = vmul.f32 %v1235, %v1224
    %v1237 = vmul.f32 %v1236, %v1235
    %v1238 = vmul.f32 0.5, %v1237
    %v1239 = vsub.f32 1.5, %v1238
    %v1240 = vmul.f32 %v1235, %v1239
    %vm1241 = vweird.f32 %v1224
    %vm1242 = vweird.f32 %v1235
    %vm1243 = vmor %vm1241, %vm1242
    %v1244 = vsel %vm1243, %v1235, %v1240
    %v1245 = vmul.f32 %v1211, %v1234
    %v1246 = vmul.f32 %v1212, %v1244
    %v1248 = vperm.slane %v1200, 0
    %v1250 = vmul.f32 %v1245, %v1248
    %v1251 = vmul.f32 %v1246, %v1248
    %v1253 = vperm.slane %v1202, 0
    %v1255 = vadd.f32 %v1250, %v1253
    %v1256 = vadd.f32 %v1251, %v1253
    %v1257 = vld [vmem:[#allocation13] sm:$0xff]
    %v1258 = vld [vmem:[#allocation13 + $0x8] sm:$0xff]
    %v1259 = vld [vmem:[#allocation13 + $0x10] sm:$0xff]
    %v1260 = vld [vmem:[#allocation13 + $0x18] sm:$0xff]
    %v1261 = vld [vmem:[%s17] sm:$0x1]
    %v1263 = vperm.slane %v1261, 0
    %v1266 = vsel %vm191, %v1255, 0
    %v1269 = vsel %vm191, %v1256, 0
    %1271 = vmatpush.msra.mxu0 0.0
    %1272 = vmatpush.msra.mxu0 0.0
    %1273 = vmatpush.msra.mxu0 0.0
    %1274 = vmatpush.msra.mxu0 0.0
    %1275 = vmatpush.msra.mxu0 0.0
    %1276 = vmatpush.msra.mxu0 0.0
    %1277 = vmatpush.msra.mxu0 0.0
    %1278 = vmatpush.msra.mxu0 0.0
    %1279 = vmatpush.msra.mxu0 0.0
    %1280 = vmatpush.msra.mxu0 0.0
    %1281 = vmatpush.msra.mxu0 0.0
    %1282 = vmatpush.msra.mxu0 0.0
    %1283 = vmatpush.msra.mxu0 %v1260
    %1284 = vmatpush.msra.mxu0 %v1259
    %1285 = vmatpush.msra.mxu0 %v1258
    %1286 = vmatpush.msra.mxu0 %v1257
    %1287 = vmatmul.f32.gmra.mxu0 %v1266
    %v1288 = vpop.f32.mrf.mxu0
    %v1289 = vadd.f32 %v1263, %v1288
    %1290 = vmatmul.f32.gmra.mxu0 %v1269
    %v1291 = vpop.f32.mrf.mxu0
    %v1292 = vadd.f32 %v1263, %v1291
    %1293 = vdwg.mxu0
    %v1294 = vtanh.pop %v1289
    %v1295 = vtanh.pop %v1292
    %v1296 = vld [vmem:[#allocation14] sm:$0xff]
    %v1297 = vld [vmem:[#allocation14 + $0x8] sm:$0xff]
    %v1298 = vld [vmem:[#allocation14 + $0x10] sm:$0xff]
    %v1299 = vld [vmem:[#allocation14 + $0x18] sm:$0xff]
    %v1300 = vld [vmem:[%s19] sm:$0x1]
    %v1302 = vperm.slane %v1300, 0
    %v1305 = vsel %vm191, %v1294, 0
    %v1308 = vsel %vm191, %v1295, 0
    %1310 = vmatpush.msra.mxu0 0.0
    %1311 = vmatpush.msra.mxu0 0.0
    %1312 = vmatpush.msra.mxu0 0.0
    %1313 = vmatpush.msra.mxu0 0.0
    %1314 = vmatpush.msra.mxu0 0.0
    %1315 = vmatpush.msra.mxu0 0.0
    %1316 = vmatpush.msra.mxu0 0.0
    %1317 = vmatpush.msra.mxu0 0.0
    %1318 = vmatpush.msra.mxu0 0.0
    %1319 = vmatpush.msra.mxu0 0.0
    %1320 = vmatpush.msra.mxu0 0.0
    %1321 = vmatpush.msra.mxu0 0.0
    %1322 = vmatpush.msra.mxu0 %v1299
    %1323 = vmatpush.msra.mxu0 %v1298
    %1324 = vmatpush.msra.mxu0 %v1297
    %1325 = vmatpush.msra.mxu0 %v1296
    %1326 = vmatmul.f32.gmra.mxu0 %v1305
    %v1327 = vpop.f32.mrf.mxu0
    %v1328 = vadd.f32 %v1302, %v1327
    %1329 = vmatmul.f32.gmra.mxu0 %v1308
    %v1330 = vpop.f32.mrf.mxu0
    %v1331 = vadd.f32 %v1302, %v1330
    %1332 = vdwg.mxu0
    %1333 = vst [vmem:[#allocation16] sm:$0xff] %v1328
    %1334 = vst [vmem:[#allocation16 + $0x8] sm:$0xff] %v1331
    // Predicated region
    $region114: #{tpu_custom_call.1} parent=1 // pred_check
      _
    $region115: #{tpu_custom_call.1} parent=1 // pred_check_branch
      %1336 = sbr.rel (0) target = $region117
    $region116: #{tpu_custom_call.1} parent=1 // pred_region
      %1338 = vsyncadd [#allocation4], 0
      %s1339 = sshll.u32 [#allocation16], 4
      %s1340 = int_to_ptr.vmem [resolvable:$true] %s1339
      %s1341 = sshll.u32 %s20, 4
      %s1342 = int_to_ptr.hbm [resolvable:$true] %s1341
      %1347 = dma.vmem_to_hbm [thread:$0]  %s1340, 256, %s1342, [#allocation4], 128, 128, 8
    $region117: #{tpu_custom_call.1} parent=1 // pred_fallthru
      _
    // Predicated region
    $region118: #{tpu_custom_call.1} parent=1 // pred_check
      _
    $region119: #{tpu_custom_call.1} parent=1 // pred_check_branch
      %1349 = sbr.rel (0) target = $region121
    $region120: #{tpu_custom_call.1} parent=1 // pred_region
      %1351 = dma.done [#allocation4], 256
    $region121: #{tpu_custom_call.1} parent=1 // pred_fallthru
      _
    %1352 = vsyncpa [#allocation3], 1
    %1353 = vsyncpa [#allocation6], 1
    %1354 = vsyncpa [#allocation9], 1
    %1355 = vsyncpa [#allocation12], 1
    %1356 = vsyncpa [#allocation15], 1
    %1357 = vsyncpa [#allocation4], 1

</llo_original>
